<compile_context>
chip_gen: v7x
topology: tpu7x:2x2x1
jax: 0.10.0
libtpu: 0.0.40
codegen_flags: <defaults>
</compile_context>

<pallas_src>
import functools

import numpy as np
import jax
import jax.numpy as jnp
from jax import lax
from jax.experimental import pallas as pl
from jax.experimental.pallas import tpu as pltpu


# ----------------------------- fused Pallas kernel ---------------------------
def _text_decoder_kernel(seq_ref,            # (T*B, 1) int32  token ids (time-major)
                         len_ref,            # (B, 1)   int32  lengths
                         z_ref,              # (B, Z)   f32
                         tbl_ref,            # (V, E)   f32    embedding table
                         wl2h_ref, bl2h_ref,                   # latent2hidden
                         wi3_ref, bi3_ref,                     # fused GRU input-side
                         wh3_ref, bhn_ref,                     # fused GRU hidden-side
                         wout_ref, bout_ref,                   # outputs2vocab
                         out_ref,            # (T*B, V) f32    logits (time-major)
                         h_all_ref):         # scratch (T*B, H) f32
    f32 = jnp.float32
    TB, H = h_all_ref.shape
    B = z_ref.shape[0]
    T = TB // B
    V = tbl_ref.shape[0]

    # ---- everything input-side, hoisted OFF the recurrence critical path ----
    # one-hot embedding lookup as a single MXU matmul (V = 128 -> one pass)
    ids = seq_ref[...]                                                  # (TB, 1)
    onehot = (ids == lax.broadcasted_iota(jnp.int32, (TB, V), 1)).astype(f32)
    x = jnp.dot(onehot, tbl_ref[...], preferred_element_type=f32)       # (TB, E)
    # all-gate input projection + (folded) biases in one matmul
    x3_all = jnp.dot(x, wi3_ref[...], preferred_element_type=f32) + bi3_ref[...]

    # hidden = latent2hidden(z)  (no activation, matches the PyTorch module)
    h = jnp.dot(z_ref[...], wl2h_ref[...], preferred_element_type=f32) + bl2h_ref[...]

    wh3 = wh3_ref[...]                                                  # (H, 3H)
    bhn_bh = jnp.broadcast_to(bhn_ref[...], (B, H))                     # hoisted
    len_bh = jnp.broadcast_to(len_ref[...], (B, H))                     # hoisted

    # ---- GRU recurrence: one fused (H, 3H) MXU dot per step --------------
    # T (= max_len) is small and static here, so a static unroll is fine; for
    # large T switch to lax.fori_loop(..., unroll=True) with pl.ds indexing.
    for t in range(T):
        x3 = x3_all[t * B:(t + 1) * B, :]                               # (B, 3H)
        gh = jnp.dot(h, wh3, preferred_element_type=f32)                # (B, 3H)

        r = jax.nn.sigmoid(x3[:, :H] + gh[:, :H])
        zg = jax.nn.sigmoid(x3[:, H:2 * H] + gh[:, H:2 * H])
        n = jnp.tanh(x3[:, 2 * H:] + r * (gh[:, 2 * H:] + bhn_bh))
        h_new = (1.0 - zg) * n + zg * h

        valid = t < len_bh                                              # (B, H)
        h = jnp.where(valid, h_new, h)                   # freeze finished seqs
        h_all_ref[pl.ds(t * B, B), :] = jnp.where(valid, h_new, 0.0)    # pad->0

    # ---- outputs2vocab: ONE (T*B, H) @ (H, V) matmul, lane-dense store ----
    out_ref[...] = (jnp.dot(h_all_ref[...], wout_ref[...],
                            preferred_element_type=f32) + bout_ref[...])


# ----------------------------- wrapper ---------------------------------------
@functools.partial(jax.jit, static_argnames=("max_len",))
def _fused_forward(params, z, seq, lengths, *, max_len):
    B = seq.shape[0]
    V = params["wout"].shape[1]
    H = params["wh3"].shape[0]
    T = max_len                                       # static: unroll only max_len

    # time-major flat ids: row t*B + b  <->  (batch b, step t)
    seq_flat = jnp.transpose(seq[:, :T].astype(jnp.int32), (1, 0)).reshape(T * B, 1)
    len_col = lengths.astype(jnp.int32).reshape(B, 1)

    out_flat = pl.pallas_call(
        _text_decoder_kernel,
        out_shape=jax.ShapeDtypeStruct((T * B, V), jnp.float32),
        in_specs=[pl.BlockSpec(memory_space=pltpu.MemorySpace.VMEM)] * 12,
        out_specs=pl.BlockSpec(memory_space=pltpu.MemorySpace.VMEM),
        scratch_shapes=[pltpu.VMEM((T * B, H), jnp.float32)],
    )(seq_flat, len_col, z,
      params["emb_table"],
      params["wl2h"], params["bl2h"],
      params["wi3"], params["bi3"],
      params["wh3"], params["bhn"],
      params["wout"], params["bout"])

    # tiny (T*B, V) -> (B, T, V) relayout, done once outside the kernel
    return jnp.transpose(out_flat.reshape(T, B, V), (1, 0, 2))


def text_decoder_forward(params, z, seq, lengths):
    max_len = int(np.max(np.asarray(lengths)))        # pad_packed pads to max(length)
    return _fused_forward(params, jnp.asarray(z, jnp.float32),
                          jnp.asarray(seq), jnp.asarray(lengths),
                          max_len=max_len)


# ----------------------------- parameters ------------------------------------
def init_params(key, vocab_size, embedding_dim, hidden_dim, z_dim):
    """Weights stored pre-transposed and gate-fused ("matmul layout") at init."""
    ks = jax.random.split(key, 18)
    H = hidden_dim

    def u(k, shape, fan_in):
        b = 1.0 / float(fan_in) ** 0.5
        return jax.random.uniform(k, shape, jnp.float32, -b, b)

    # GRU gates in PyTorch order (r, z, n), pre-transposed to (in, out)
    wir = u(ks[3], (embedding_dim, H), H)
    wiz = u(ks[4], (embedding_dim, H), H)
    win = u(ks[5], (embedding_dim, H), H)
    whr = u(ks[6], (H, H), H)
    whz = u(ks[7], (H, H), H)
    whn = u(ks[8], (H, H), H)
    br = u(ks[9], (1, H), H) + u(ks[10], (1, H), H)    # b_ir + b_hr (foldable)
    bz = u(ks[11], (1, H), H) + u(ks[12], (1, H), H)   # b_iz + b_hz (foldable)
    bin_ = u(ks[13], (1, H), H)
    bhn = u(ks[14], (1, H), H)                         # must stay separate (inside r*)

    return {
        "emb_table": jax.random.normal(ks[0], (vocab_size, embedding_dim),
                                       jnp.float32),
        # latent2hidden: Linear(z_dim, H)
        "wl2h": u(ks[1], (z_dim, H), z_dim),
        "bl2h": u(ks[2], (1, H), z_dim),
        # fused GRU weights
        "wi3": jnp.concatenate([wir, wiz, win], axis=1),   # (E, 3H)
        "bi3": jnp.concatenate([br, bz, bin_], axis=1),    # (1, 3H)
        "wh3": jnp.concatenate([whr, whz, whn], axis=1),   # (H, 3H)
        "bhn": bhn,                                        # (1, H)
        # outputs2vocab: Linear(H, vocab_size)
        "wout": u(ks[15], (H, vocab_size), H),
        "bout": u(ks[16], (1, vocab_size), H),
    }


# ----------------------------- pure-JAX reference ----------------------------
def text_decoder_ref(params, z, seq, lengths):
    H = params["wh3"].shape[0]
    emb = params["emb_table"][jnp.asarray(seq)]              # (B, T, E) gather
    B, T, _ = emb.shape
    lens = jnp.asarray(lengths, jnp.int32).reshape(B, 1)
    h = jnp.asarray(z, jnp.float32) @ params["wl2h"] + params["bl2h"]
    wi3, bi3, wh3, bhn = params["wi3"], params["bi3"], params["wh3"], params["bhn"]
    outs = []
    for t in range(T):
        x3 = emb[:, t, :] @ wi3 + bi3
        gh = h @ wh3
        r = jax.nn.sigmoid(x3[:, :H] + gh[:, :H])
        zg = jax.nn.sigmoid(x3[:, H:2 * H] + gh[:, H:2 * H])
        n = jnp.tanh(x3[:, 2 * H:] + r * (gh[:, 2 * H:] + bhn))
        h_new = (1.0 - zg) * n + zg * h
        valid = t < lens
        h = jnp.where(valid, h_new, h)
        outs.append(jnp.where(valid, h_new, 0.0))
    out = jnp.stack(outs, axis=1)                            # (B, T, H)
    logits = out @ params["wout"] + params["bout"]           # (B, T, V)
    max_len = int(np.max(np.asarray(lengths)))
    return logits[:, :max_len, :]


# ----------------------------- main -------------------------------------------
if __name__ == "__main__":
    vocab_size, embedding_dim, hidden_dim, z_dim = 128, 32, 32, 16
    batch, seq_len = 2, 8
    sos_index, eos_index, pad_index, unk_index = 1, 2, 0, 3  # (unused at dropout=0)

    key = jax.random.PRNGKey(0)
    kp, kz, ks = jax.random.split(key, 3)
    params = init_params(kp, vocab_size, embedding_dim, hidden_dim, z_dim)
    z = jax.random.normal(kz, (batch, z_dim), jnp.float32)
    seq = jax.random.randint(ks, (batch, seq_len), 4, vocab_size, jnp.int32)
    lengths = np.array([seq_len, 5], np.int32)               # ragged batch

    out = jax.block_until_ready(text_decoder_forward(params, z, seq, lengths))
    ref = jax.block_until_ready(text_decoder_ref(params, z, seq, lengths))

    assert out.shape == (batch, int(lengths.max()), vocab_size), out.shape
    assert bool(jnp.all(jnp.isfinite(out)))
    err = float(jnp.max(jnp.abs(out - ref)))
    assert bool(jnp.allclose(out, ref, atol=1e-4, rtol=1e-4)), err

    print("KERNEL_OK")
</pallas_src>

<mosaic_0001>
module attributes {stable_mosaic.version = 11 : i64} {
  func.func @_text_decoder_kernel(%arg0: memref<16x1xi32, #tpu.memory_space<vmem>>, %arg1: memref<2x1xi32, #tpu.memory_space<vmem>>, %arg2: memref<2x16xf32, #tpu.memory_space<vmem>>, %arg3: memref<128x32xf32, #tpu.memory_space<vmem>>, %arg4: memref<16x32xf32, #tpu.memory_space<vmem>>, %arg5: memref<1x32xf32, #tpu.memory_space<vmem>>, %arg6: memref<32x96xf32, #tpu.memory_space<vmem>>, %arg7: memref<1x96xf32, #tpu.memory_space<vmem>>, %arg8: memref<32x96xf32, #tpu.memory_space<vmem>>, %arg9: memref<1x32xf32, #tpu.memory_space<vmem>>, %arg10: memref<32x128xf32, #tpu.memory_space<vmem>>, %arg11: memref<1x128xf32, #tpu.memory_space<vmem>>, %arg12: memref<16x128xf32, #tpu.memory_space<vmem>>, %arg13: memref<16x32xf32, #tpu.memory_space<vmem>>) attributes {dimension_semantics = [], scalar_prefetch = 0 : i64, scratch_operands = 1 : i64, tpu.core_type = #tpu.core_type<tc>} {
    %c0 = arith.constant 0 : index
    %c0_0 = arith.constant 0 : index
    %0 = vector.load %arg0[%c0, %c0_0] : memref<16x1xi32, #tpu.memory_space<vmem>>, vector<16x1xi32>
    %1 = tpu.iota {dimensions = array<i32: 1>} : vector<16x128xi32>
    %2 = vector.broadcast %0 : vector<16x1xi32> to vector<16x128xi32>
    %3 = arith.cmpi eq, %2, %1 : vector<16x128xi32>
    %4 = arith.extui %3 : vector<16x128xi1> to vector<16x128xi32>
    %5 = arith.sitofp %4 : vector<16x128xi32> to vector<16x128xf32>
    %c0_1 = arith.constant 0 : index
    %c0_2 = arith.constant 0 : index
    %6 = vector.load %arg3[%c0_1, %c0_2] : memref<128x32xf32, #tpu.memory_space<vmem>>, vector<128x32xf32>
    %cst = arith.constant dense<0.000000e+00> : vector<16x32xf32>
    %7 = tpu.matmul %5, %6, %cst {dimension_numbers = #tpu.dot_dimension_numbers<[1], [0], [0], [1], [0, 0, 1, 1], [], []>} : vector<16x128xf32>, vector<128x32xf32>, vector<16x32xf32> -> vector<16x32xf32>
    %c0_3 = arith.constant 0 : index
    %c0_4 = arith.constant 0 : index
    %8 = vector.load %arg6[%c0_3, %c0_4] : memref<32x96xf32, #tpu.memory_space<vmem>>, vector<32x96xf32>
    %cst_5 = arith.constant dense<0.000000e+00> : vector<16x96xf32>
    %9 = tpu.matmul %7, %8, %cst_5 {dimension_numbers = #tpu.dot_dimension_numbers<[1], [0], [0], [1], [0, 0, 1, 1], [], []>} : vector<16x32xf32>, vector<32x96xf32>, vector<16x96xf32> -> vector<16x96xf32>
    %c0_6 = arith.constant 0 : index
    %c0_7 = arith.constant 0 : index
    %10 = vector.load %arg7[%c0_6, %c0_7] : memref<1x96xf32, #tpu.memory_space<vmem>>, vector<1x96xf32>
    %11 = vector.broadcast %10 : vector<1x96xf32> to vector<16x96xf32>
    %12 = arith.addf %9, %11 : vector<16x96xf32>
    %c0_8 = arith.constant 0 : index
    %c0_9 = arith.constant 0 : index
    %13 = vector.load %arg2[%c0_8, %c0_9] : memref<2x16xf32, #tpu.memory_space<vmem>>, vector<2x16xf32>
    %c0_10 = arith.constant 0 : index
    %c0_11 = arith.constant 0 : index
    %14 = vector.load %arg4[%c0_10, %c0_11] : memref<16x32xf32, #tpu.memory_space<vmem>>, vector<16x32xf32>
    %cst_12 = arith.constant dense<0.000000e+00> : vector<2x32xf32>
    %15 = tpu.matmul %13, %14, %cst_12 {dimension_numbers = #tpu.dot_dimension_numbers<[1], [0], [0], [1], [0, 0, 1, 1], [], []>} : vector<2x16xf32>, vector<16x32xf32>, vector<2x32xf32> -> vector<2x32xf32>
    %c0_13 = arith.constant 0 : index
    %c0_14 = arith.constant 0 : index
    %16 = vector.load %arg5[%c0_13, %c0_14] : memref<1x32xf32, #tpu.memory_space<vmem>>, vector<1x32xf32>
    %17 = vector.broadcast %16 : vector<1x32xf32> to vector<2x32xf32>
    %18 = arith.addf %15, %17 : vector<2x32xf32>
    %c0_15 = arith.constant 0 : index
    %c0_16 = arith.constant 0 : index
    %19 = vector.load %arg8[%c0_15, %c0_16] : memref<32x96xf32, #tpu.memory_space<vmem>>, vector<32x96xf32>
    %c0_17 = arith.constant 0 : index
    %c0_18 = arith.constant 0 : index
    %20 = vector.load %arg9[%c0_17, %c0_18] : memref<1x32xf32, #tpu.memory_space<vmem>>, vector<1x32xf32>
    %21 = vector.shape_cast %20 : vector<1x32xf32> to vector<1x32xf32>
    %22 = vector.broadcast %21 : vector<1x32xf32> to vector<2x32xf32>
    %c0_19 = arith.constant 0 : index
    %c0_20 = arith.constant 0 : index
    %23 = vector.load %arg1[%c0_19, %c0_20] : memref<2x1xi32, #tpu.memory_space<vmem>>, vector<2x1xi32>
    %24 = vector.shape_cast %23 : vector<2x1xi32> to vector<2x1xi32>
    %25 = vector.broadcast %24 : vector<2x1xi32> to vector<2x32xi32>
    %26 = vector.extract_strided_slice %12 {offsets = [0, 0], sizes = [2, 96], strides = [1, 1]} : vector<16x96xf32> to vector<2x96xf32>
    %cst_21 = arith.constant dense<0.000000e+00> : vector<2x96xf32>
    %27 = tpu.matmul %18, %19, %cst_21 {dimension_numbers = #tpu.dot_dimension_numbers<[1], [0], [0], [1], [0, 0, 1, 1], [], []>} : vector<2x32xf32>, vector<32x96xf32>, vector<2x96xf32> -> vector<2x96xf32>
    %28 = vector.extract_strided_slice %26 {offsets = [0, 0], sizes = [2, 32], strides = [1, 1]} : vector<2x96xf32> to vector<2x32xf32>
    %29 = vector.extract_strided_slice %27 {offsets = [0, 0], sizes = [2, 32], strides = [1, 1]} : vector<2x96xf32> to vector<2x32xf32>
    %30 = arith.addf %28, %29 : vector<2x32xf32>
    %31 = arith.negf %30 : vector<2x32xf32>
    %32 = math.exp %31 : vector<2x32xf32>
    %cst_22 = arith.constant 1.000000e+00 : f32
    %33 = vector.broadcast %cst_22 : f32 to vector<2x32xf32>
    %34 = arith.addf %33, %32 : vector<2x32xf32>
    %35 = arith.divf %33, %34 : vector<2x32xf32>
    %36 = vector.extract_strided_slice %26 {offsets = [0, 32], sizes = [2, 32], strides = [1, 1]} : vector<2x96xf32> to vector<2x32xf32>
    %37 = vector.extract_strided_slice %27 {offsets = [0, 32], sizes = [2, 32], strides = [1, 1]} : vector<2x96xf32> to vector<2x32xf32>
    %38 = arith.addf %36, %37 : vector<2x32xf32>
    %39 = arith.negf %38 : vector<2x32xf32>
    %40 = math.exp %39 : vector<2x32xf32>
    %cst_23 = arith.constant 1.000000e+00 : f32
    %41 = vector.broadcast %cst_23 : f32 to vector<2x32xf32>
    %42 = arith.addf %41, %40 : vector<2x32xf32>
    %43 = arith.divf %41, %42 : vector<2x32xf32>
    %44 = vector.extract_strided_slice %26 {offsets = [0, 64], sizes = [2, 32], strides = [1, 1]} : vector<2x96xf32> to vector<2x32xf32>
    %45 = vector.extract_strided_slice %27 {offsets = [0, 64], sizes = [2, 32], strides = [1, 1]} : vector<2x96xf32> to vector<2x32xf32>
    %46 = arith.addf %45, %22 : vector<2x32xf32>
    %47 = arith.mulf %35, %46 : vector<2x32xf32>
    %48 = arith.addf %44, %47 : vector<2x32xf32>
    %49 = math.tanh %48 : vector<2x32xf32>
    %cst_24 = arith.constant 1.000000e+00 : f32
    %50 = vector.broadcast %cst_24 : f32 to vector<2x32xf32>
    %51 = arith.subf %50, %43 : vector<2x32xf32>
    %52 = arith.mulf %51, %49 : vector<2x32xf32>
    %53 = arith.mulf %43, %18 : vector<2x32xf32>
    %54 = arith.addf %52, %53 : vector<2x32xf32>
    %c0_i32 = arith.constant 0 : i32
    %55 = vector.broadcast %c0_i32 : i32 to vector<2x32xi32>
    %56 = arith.cmpi sgt, %25, %55 : vector<2x32xi32>
    %57 = arith.select %56, %54, %18 : vector<2x32xi1>, vector<2x32xf32>
    %cst_25 = arith.constant 0.000000e+00 : f32
    %58 = vector.broadcast %cst_25 : f32 to vector<2x32xf32>
    %59 = arith.select %56, %54, %58 : vector<2x32xi1>, vector<2x32xf32>
    %c0_26 = arith.constant 0 : index
    %c0_27 = arith.constant 0 : index
    %60 = vector.load %arg13[%c0_26, %c0_27] : memref<16x32xf32, #tpu.memory_space<vmem>>, vector<2x32xf32>
    tpu.vector_store %arg13[%c0_26, %c0_27], %59 {strides = array<i32>} : memref<16x32xf32, #tpu.memory_space<vmem>>, vector<2x32xf32>,
    %61 = vector.extract_strided_slice %12 {offsets = [2, 0], sizes = [2, 96], strides = [1, 1]} : vector<16x96xf32> to vector<2x96xf32>
    %cst_28 = arith.constant dense<0.000000e+00> : vector<2x96xf32>
    %62 = tpu.matmul %57, %19, %cst_28 {dimension_numbers = #tpu.dot_dimension_numbers<[1], [0], [0], [1], [0, 0, 1, 1], [], []>} : vector<2x32xf32>, vector<32x96xf32>, vector<2x96xf32> -> vector<2x96xf32>
    %63 = vector.extract_strided_slice %61 {offsets = [0, 0], sizes = [2, 32], strides = [1, 1]} : vector<2x96xf32> to vector<2x32xf32>
    %64 = vector.extract_strided_slice %62 {offsets = [0, 0], sizes = [2, 32], strides = [1, 1]} : vector<2x96xf32> to vector<2x32xf32>
    %65 = arith.addf %63, %64 : vector<2x32xf32>
    %66 = arith.negf %65 : vector<2x32xf32>
    %67 = math.exp %66 : vector<2x32xf32>
    %cst_29 = arith.constant 1.000000e+00 : f32
    %68 = vector.broadcast %cst_29 : f32 to vector<2x32xf32>
    %69 = arith.addf %68, %67 : vector<2x32xf32>
    %70 = arith.divf %68, %69 : vector<2x32xf32>
    %71 = vector.extract_strided_slice %61 {offsets = [0, 32], sizes = [2, 32], strides = [1, 1]} : vector<2x96xf32> to vector<2x32xf32>
    %72 = vector.extract_strided_slice %62 {offsets = [0, 32], sizes = [2, 32], strides = [1, 1]} : vector<2x96xf32> to vector<2x32xf32>
    %73 = arith.addf %71, %72 : vector<2x32xf32>
    %74 = arith.negf %73 : vector<2x32xf32>
    %75 = math.exp %74 : vector<2x32xf32>
    %cst_30 = arith.constant 1.000000e+00 : f32
    %76 = vector.broadcast %cst_30 : f32 to vector<2x32xf32>
    %77 = arith.addf %76, %75 : vector<2x32xf32>
    %78 = arith.divf %76, %77 : vector<2x32xf32>
    %79 = vector.extract_strided_slice %61 {offsets = [0, 64], sizes = [2, 32], strides = [1, 1]} : vector<2x96xf32> to vector<2x32xf32>
    %80 = vector.extract_strided_slice %62 {offsets = [0, 64], sizes = [2, 32], strides = [1, 1]} : vector<2x96xf32> to vector<2x32xf32>
    %81 = arith.addf %80, %22 : vector<2x32xf32>
    %82 = arith.mulf %70, %81 : vector<2x32xf32>
    %83 = arith.addf %79, %82 : vector<2x32xf32>
    %84 = math.tanh %83 : vector<2x32xf32>
    %cst_31 = arith.constant 1.000000e+00 : f32
    %85 = vector.broadcast %cst_31 : f32 to vector<2x32xf32>
    %86 = arith.subf %85, %78 : vector<2x32xf32>
    %87 = arith.mulf %86, %84 : vector<2x32xf32>
    %88 = arith.mulf %78, %57 : vector<2x32xf32>
    %89 = arith.addf %87, %88 : vector<2x32xf32>
    %c1_i32 = arith.constant 1 : i32
    %90 = vector.broadcast %c1_i32 : i32 to vector<2x32xi32>
    %91 = arith.cmpi sgt, %25, %90 : vector<2x32xi32>
    %92 = arith.select %91, %89, %57 : vector<2x32xi1>, vector<2x32xf32>
    %cst_32 = arith.constant 0.000000e+00 : f32
    %93 = vector.broadcast %cst_32 : f32 to vector<2x32xf32>
    %94 = arith.select %91, %89, %93 : vector<2x32xi1>, vector<2x32xf32>
    %c2 = arith.constant 2 : index
    %c0_33 = arith.constant 0 : index
    %95 = vector.load %arg13[%c2, %c0_33] : memref<16x32xf32, #tpu.memory_space<vmem>>, vector<2x32xf32>
    tpu.vector_store %arg13[%c2, %c0_33], %94 {strides = array<i32>} : memref<16x32xf32, #tpu.memory_space<vmem>>, vector<2x32xf32>,
    %96 = vector.extract_strided_slice %12 {offsets = [4, 0], sizes = [2, 96], strides = [1, 1]} : vector<16x96xf32> to vector<2x96xf32>
    %cst_34 = arith.constant dense<0.000000e+00> : vector<2x96xf32>
    %97 = tpu.matmul %92, %19, %cst_34 {dimension_numbers = #tpu.dot_dimension_numbers<[1], [0], [0], [1], [0, 0, 1, 1], [], []>} : vector<2x32xf32>, vector<32x96xf32>, vector<2x96xf32> -> vector<2x96xf32>
    %98 = vector.extract_strided_slice %96 {offsets = [0, 0], sizes = [2, 32], strides = [1, 1]} : vector<2x96xf32> to vector<2x32xf32>
    %99 = vector.extract_strided_slice %97 {offsets = [0, 0], sizes = [2, 32], strides = [1, 1]} : vector<2x96xf32> to vector<2x32xf32>
    %100 = arith.addf %98, %99 : vector<2x32xf32>
    %101 = arith.negf %100 : vector<2x32xf32>
    %102 = math.exp %101 : vector<2x32xf32>
    %cst_35 = arith.constant 1.000000e+00 : f32
    %103 = vector.broadcast %cst_35 : f32 to vector<2x32xf32>
    %104 = arith.addf %103, %102 : vector<2x32xf32>
    %105 = arith.divf %103, %104 : vector<2x32xf32>
    %106 = vector.extract_strided_slice %96 {offsets = [0, 32], sizes = [2, 32], strides = [1, 1]} : vector<2x96xf32> to vector<2x32xf32>
    %107 = vector.extract_strided_slice %97 {offsets = [0, 32], sizes = [2, 32], strides = [1, 1]} : vector<2x96xf32> to vector<2x32xf32>
    %108 = arith.addf %106, %107 : vector<2x32xf32>
    %109 = arith.negf %108 : vector<2x32xf32>
    %110 = math.exp %109 : vector<2x32xf32>
    %cst_36 = arith.constant 1.000000e+00 : f32
    %111 = vector.broadcast %cst_36 : f32 to vector<2x32xf32>
    %112 = arith.addf %111, %110 : vector<2x32xf32>
    %113 = arith.divf %111, %112 : vector<2x32xf32>
    %114 = vector.extract_strided_slice %96 {offsets = [0, 64], sizes = [2, 32], strides = [1, 1]} : vector<2x96xf32> to vector<2x32xf32>
    %115 = vector.extract_strided_slice %97 {offsets = [0, 64], sizes = [2, 32], strides = [1, 1]} : vector<2x96xf32> to vector<2x32xf32>
    %116 = arith.addf %115, %22 : vector<2x32xf32>
    %117 = arith.mulf %105, %116 : vector<2x32xf32>
    %118 = arith.addf %114, %117 : vector<2x32xf32>
    %119 = math.tanh %118 : vector<2x32xf32>
    %cst_37 = arith.constant 1.000000e+00 : f32
    %120 = vector.broadcast %cst_37 : f32 to vector<2x32xf32>
    %121 = arith.subf %120, %113 : vector<2x32xf32>
    %122 = arith.mulf %121, %119 : vector<2x32xf32>
    %123 = arith.mulf %113, %92 : vector<2x32xf32>
    %124 = arith.addf %122, %123 : vector<2x32xf32>
    %c2_i32 = arith.constant 2 : i32
    %125 = vector.broadcast %c2_i32 : i32 to vector<2x32xi32>
    %126 = arith.cmpi sgt, %25, %125 : vector<2x32xi32>
    %127 = arith.select %126, %124, %92 : vector<2x32xi1>, vector<2x32xf32>
    %cst_38 = arith.constant 0.000000e+00 : f32
    %128 = vector.broadcast %cst_38 : f32 to vector<2x32xf32>
    %129 = arith.select %126, %124, %128 : vector<2x32xi1>, vector<2x32xf32>
    %c4 = arith.constant 4 : index
    %c0_39 = arith.constant 0 : index
    %130 = vector.load %arg13[%c4, %c0_39] : memref<16x32xf32, #tpu.memory_space<vmem>>, vector<2x32xf32>
    tpu.vector_store %arg13[%c4, %c0_39], %129 {strides = array<i32>} : memref<16x32xf32, #tpu.memory_space<vmem>>, vector<2x32xf32>,
    %131 = vector.extract_strided_slice %12 {offsets = [6, 0], sizes = [2, 96], strides = [1, 1]} : vector<16x96xf32> to vector<2x96xf32>
    %cst_40 = arith.constant dense<0.000000e+00> : vector<2x96xf32>
    %132 = tpu.matmul %127, %19, %cst_40 {dimension_numbers = #tpu.dot_dimension_numbers<[1], [0], [0], [1], [0, 0, 1, 1], [], []>} : vector<2x32xf32>, vector<32x96xf32>, vector<2x96xf32> -> vector<2x96xf32>
    %133 = vector.extract_strided_slice %131 {offsets = [0, 0], sizes = [2, 32], strides = [1, 1]} : vector<2x96xf32> to vector<2x32xf32>
    %134 = vector.extract_strided_slice %132 {offsets = [0, 0], sizes = [2, 32], strides = [1, 1]} : vector<2x96xf32> to vector<2x32xf32>
    %135 = arith.addf %133, %134 : vector<2x32xf32>
    %136 = arith.negf %135 : vector<2x32xf32>
    %137 = math.exp %136 : vector<2x32xf32>
    %cst_41 = arith.constant 1.000000e+00 : f32
    %138 = vector.broadcast %cst_41 : f32 to vector<2x32xf32>
    %139 = arith.addf %138, %137 : vector<2x32xf32>
    %140 = arith.divf %138, %139 : vector<2x32xf32>
    %141 = vector.extract_strided_slice %131 {offsets = [0, 32], sizes = [2, 32], strides = [1, 1]} : vector<2x96xf32> to vector<2x32xf32>
    %142 = vector.extract_strided_slice %132 {offsets = [0, 32], sizes = [2, 32], strides = [1, 1]} : vector<2x96xf32> to vector<2x32xf32>
    %143 = arith.addf %141, %142 : vector<2x32xf32>
    %144 = arith.negf %143 : vector<2x32xf32>
    %145 = math.exp %144 : vector<2x32xf32>
    %cst_42 = arith.constant 1.000000e+00 : f32
    %146 = vector.broadcast %cst_42 : f32 to vector<2x32xf32>
    %147 = arith.addf %146, %145 : vector<2x32xf32>
    %148 = arith.divf %146, %147 : vector<2x32xf32>
    %149 = vector.extract_strided_slice %131 {offsets = [0, 64], sizes = [2, 32], strides = [1, 1]} : vector<2x96xf32> to vector<2x32xf32>
    %150 = vector.extract_strided_slice %132 {offsets = [0, 64], sizes = [2, 32], strides = [1, 1]} : vector<2x96xf32> to vector<2x32xf32>
    %151 = arith.addf %150, %22 : vector<2x32xf32>
    %152 = arith.mulf %140, %151 : vector<2x32xf32>
    %153 = arith.addf %149, %152 : vector<2x32xf32>
    %154 = math.tanh %153 : vector<2x32xf32>
    %cst_43 = arith.constant 1.000000e+00 : f32
    %155 = vector.broadcast %cst_43 : f32 to vector<2x32xf32>
    %156 = arith.subf %155, %148 : vector<2x32xf32>
    %157 = arith.mulf %156, %154 : vector<2x32xf32>
    %158 = arith.mulf %148, %127 : vector<2x32xf32>
    %159 = arith.addf %157, %158 : vector<2x32xf32>
    %c3_i32 = arith.constant 3 : i32
    %160 = vector.broadcast %c3_i32 : i32 to vector<2x32xi32>
    %161 = arith.cmpi sgt, %25, %160 : vector<2x32xi32>
    %162 = arith.select %161, %159, %127 : vector<2x32xi1>, vector<2x32xf32>
    %cst_44 = arith.constant 0.000000e+00 : f32
    %163 = vector.broadcast %cst_44 : f32 to vector<2x32xf32>
    %164 = arith.select %161, %159, %163 : vector<2x32xi1>, vector<2x32xf32>
    %c6 = arith.constant 6 : index
    %c0_45 = arith.constant 0 : index
    %165 = vector.load %arg13[%c6, %c0_45] : memref<16x32xf32, #tpu.memory_space<vmem>>, vector<2x32xf32>
    tpu.vector_store %arg13[%c6, %c0_45], %164 {strides = array<i32>} : memref<16x32xf32, #tpu.memory_space<vmem>>, vector<2x32xf32>,
    %166 = vector.extract_strided_slice %12 {offsets = [8, 0], sizes = [2, 96], strides = [1, 1]} : vector<16x96xf32> to vector<2x96xf32>
    %cst_46 = arith.constant dense<0.000000e+00> : vector<2x96xf32>
    %167 = tpu.matmul %162, %19, %cst_46 {dimension_numbers = #tpu.dot_dimension_numbers<[1], [0], [0], [1], [0, 0, 1, 1], [], []>} : vector<2x32xf32>, vector<32x96xf32>, vector<2x96xf32> -> vector<2x96xf32>
    %168 = vector.extract_strided_slice %166 {offsets = [0, 0], sizes = [2, 32], strides = [1, 1]} : vector<2x96xf32> to vector<2x32xf32>
    %169 = vector.extract_strided_slice %167 {offsets = [0, 0], sizes = [2, 32], strides = [1, 1]} : vector<2x96xf32> to vector<2x32xf32>
    %170 = arith.addf %168, %169 : vector<2x32xf32>
    %171 = arith.negf %170 : vector<2x32xf32>
    %172 = math.exp %171 : vector<2x32xf32>
    %cst_47 = arith.constant 1.000000e+00 : f32
    %173 = vector.broadcast %cst_47 : f32 to vector<2x32xf32>
    %174 = arith.addf %173, %172 : vector<2x32xf32>
    %175 = arith.divf %173, %174 : vector<2x32xf32>
    %176 = vector.extract_strided_slice %166 {offsets = [0, 32], sizes = [2, 32], strides = [1, 1]} : vector<2x96xf32> to vector<2x32xf32>
    %177 = vector.extract_strided_slice %167 {offsets = [0, 32], sizes = [2, 32], strides = [1, 1]} : vector<2x96xf32> to vector<2x32xf32>
    %178 = arith.addf %176, %177 : vector<2x32xf32>
    %179 = arith.negf %178 : vector<2x32xf32>
    %180 = math.exp %179 : vector<2x32xf32>
    %cst_48 = arith.constant 1.000000e+00 : f32
    %181 = vector.broadcast %cst_48 : f32 to vector<2x32xf32>
    %182 = arith.addf %181, %180 : vector<2x32xf32>
    %183 = arith.divf %181, %182 : vector<2x32xf32>
    %184 = vector.extract_strided_slice %166 {offsets = [0, 64], sizes = [2, 32], strides = [1, 1]} : vector<2x96xf32> to vector<2x32xf32>
    %185 = vector.extract_strided_slice %167 {offsets = [0, 64], sizes = [2, 32], strides = [1, 1]} : vector<2x96xf32> to vector<2x32xf32>
    %186 = arith.addf %185, %22 : vector<2x32xf32>
    %187 = arith.mulf %175, %186 : vector<2x32xf32>
    %188 = arith.addf %184, %187 : vector<2x32xf32>
    %189 = math.tanh %188 : vector<2x32xf32>
    %cst_49 = arith.constant 1.000000e+00 : f32
    %190 = vector.broadcast %cst_49 : f32 to vector<2x32xf32>
    %191 = arith.subf %190, %183 : vector<2x32xf32>
    %192 = arith.mulf %191, %189 : vector<2x32xf32>
    %193 = arith.mulf %183, %162 : vector<2x32xf32>
    %194 = arith.addf %192, %193 : vector<2x32xf32>
    %c4_i32 = arith.constant 4 : i32
    %195 = vector.broadcast %c4_i32 : i32 to vector<2x32xi32>
    %196 = arith.cmpi sgt, %25, %195 : vector<2x32xi32>
    %197 = arith.select %196, %194, %162 : vector<2x32xi1>, vector<2x32xf32>
    %cst_50 = arith.constant 0.000000e+00 : f32
    %198 = vector.broadcast %cst_50 : f32 to vector<2x32xf32>
    %199 = arith.select %196, %194, %198 : vector<2x32xi1>, vector<2x32xf32>
    %c8 = arith.constant 8 : index
    %c0_51 = arith.constant 0 : index
    %200 = vector.load %arg13[%c8, %c0_51] : memref<16x32xf32, #tpu.memory_space<vmem>>, vector<2x32xf32>
    tpu.vector_store %arg13[%c8, %c0_51], %199 {strides = array<i32>} : memref<16x32xf32, #tpu.memory_space<vmem>>, vector<2x32xf32>,
    %201 = vector.extract_strided_slice %12 {offsets = [10, 0], sizes = [2, 96], strides = [1, 1]} : vector<16x96xf32> to vector<2x96xf32>
    %cst_52 = arith.constant dense<0.000000e+00> : vector<2x96xf32>
    %202 = tpu.matmul %197, %19, %cst_52 {dimension_numbers = #tpu.dot_dimension_numbers<[1], [0], [0], [1], [0, 0, 1, 1], [], []>} : vector<2x32xf32>, vector<32x96xf32>, vector<2x96xf32> -> vector<2x96xf32>
    %203 = vector.extract_strided_slice %201 {offsets = [0, 0], sizes = [2, 32], strides = [1, 1]} : vector<2x96xf32> to vector<2x32xf32>
    %204 = vector.extract_strided_slice %202 {offsets = [0, 0], sizes = [2, 32], strides = [1, 1]} : vector<2x96xf32> to vector<2x32xf32>
    %205 = arith.addf %203, %204 : vector<2x32xf32>
    %206 = arith.negf %205 : vector<2x32xf32>
    %207 = math.exp %206 : vector<2x32xf32>
    %cst_53 = arith.constant 1.000000e+00 : f32
    %208 = vector.broadcast %cst_53 : f32 to vector<2x32xf32>
    %209 = arith.addf %208, %207 : vector<2x32xf32>
    %210 = arith.divf %208, %209 : vector<2x32xf32>
    %211 = vector.extract_strided_slice %201 {offsets = [0, 32], sizes = [2, 32], strides = [1, 1]} : vector<2x96xf32> to vector<2x32xf32>
    %212 = vector.extract_strided_slice %202 {offsets = [0, 32], sizes = [2, 32], strides = [1, 1]} : vector<2x96xf32> to vector<2x32xf32>
    %213 = arith.addf %211, %212 : vector<2x32xf32>
    %214 = arith.negf %213 : vector<2x32xf32>
    %215 = math.exp %214 : vector<2x32xf32>
    %cst_54 = arith.constant 1.000000e+00 : f32
    %216 = vector.broadcast %cst_54 : f32 to vector<2x32xf32>
    %217 = arith.addf %216, %215 : vector<2x32xf32>
    %218 = arith.divf %216, %217 : vector<2x32xf32>
    %219 = vector.extract_strided_slice %201 {offsets = [0, 64], sizes = [2, 32], strides = [1, 1]} : vector<2x96xf32> to vector<2x32xf32>
    %220 = vector.extract_strided_slice %202 {offsets = [0, 64], sizes = [2, 32], strides = [1, 1]} : vector<2x96xf32> to vector<2x32xf32>
    %221 = arith.addf %220, %22 : vector<2x32xf32>
    %222 = arith.mulf %210, %221 : vector<2x32xf32>
    %223 = arith.addf %219, %222 : vector<2x32xf32>
    %224 = math.tanh %223 : vector<2x32xf32>
    %cst_55 = arith.constant 1.000000e+00 : f32
    %225 = vector.broadcast %cst_55 : f32 to vector<2x32xf32>
    %226 = arith.subf %225, %218 : vector<2x32xf32>
    %227 = arith.mulf %226, %224 : vector<2x32xf32>
    %228 = arith.mulf %218, %197 : vector<2x32xf32>
    %229 = arith.addf %227, %228 : vector<2x32xf32>
    %c5_i32 = arith.constant 5 : i32
    %230 = vector.broadcast %c5_i32 : i32 to vector<2x32xi32>
    %231 = arith.cmpi sgt, %25, %230 : vector<2x32xi32>
    %232 = arith.select %231, %229, %197 : vector<2x32xi1>, vector<2x32xf32>
    %cst_56 = arith.constant 0.000000e+00 : f32
    %233 = vector.broadcast %cst_56 : f32 to vector<2x32xf32>
    %234 = arith.select %231, %229, %233 : vector<2x32xi1>, vector<2x32xf32>
    %c10 = arith.constant 10 : index
    %c0_57 = arith.constant 0 : index
    %235 = vector.load %arg13[%c10, %c0_57] : memref<16x32xf32, #tpu.memory_space<vmem>>, vector<2x32xf32>
    tpu.vector_store %arg13[%c10, %c0_57], %234 {strides = array<i32>} : memref<16x32xf32, #tpu.memory_space<vmem>>, vector<2x32xf32>,
    %236 = vector.extract_strided_slice %12 {offsets = [12, 0], sizes = [2, 96], strides = [1, 1]} : vector<16x96xf32> to vector<2x96xf32>
    %cst_58 = arith.constant dense<0.000000e+00> : vector<2x96xf32>
    %237 = tpu.matmul %232, %19, %cst_58 {dimension_numbers = #tpu.dot_dimension_numbers<[1], [0], [0], [1], [0, 0, 1, 1], [], []>} : vector<2x32xf32>, vector<32x96xf32>, vector<2x96xf32> -> vector<2x96xf32>
    %238 = vector.extract_strided_slice %236 {offsets = [0, 0], sizes = [2, 32], strides = [1, 1]} : vector<2x96xf32> to vector<2x32xf32>
    %239 = vector.extract_strided_slice %237 {offsets = [0, 0], sizes = [2, 32], strides = [1, 1]} : vector<2x96xf32> to vector<2x32xf32>
    %240 = arith.addf %238, %239 : vector<2x32xf32>
    %241 = arith.negf %240 : vector<2x32xf32>
    %242 = math.exp %241 : vector<2x32xf32>
    %cst_59 = arith.constant 1.000000e+00 : f32
    %243 = vector.broadcast %cst_59 : f32 to vector<2x32xf32>
    %244 = arith.addf %243, %242 : vector<2x32xf32>
    %245 = arith.divf %243, %244 : vector<2x32xf32>
    %246 = vector.extract_strided_slice %236 {offsets = [0, 32], sizes = [2, 32], strides = [1, 1]} : vector<2x96xf32> to vector<2x32xf32>
    %247 = vector.extract_strided_slice %237 {offsets = [0, 32], sizes = [2, 32], strides = [1, 1]} : vector<2x96xf32> to vector<2x32xf32>
    %248 = arith.addf %246, %247 : vector<2x32xf32>
    %249 = arith.negf %248 : vector<2x32xf32>
    %250 = math.exp %249 : vector<2x32xf32>
    %cst_60 = arith.constant 1.000000e+00 : f32
    %251 = vector.broadcast %cst_60 : f32 to vector<2x32xf32>
    %252 = arith.addf %251, %250 : vector<2x32xf32>
    %253 = arith.divf %251, %252 : vector<2x32xf32>
    %254 = vector.extract_strided_slice %236 {offsets = [0, 64], sizes = [2, 32], strides = [1, 1]} : vector<2x96xf32> to vector<2x32xf32>
    %255 = vector.extract_strided_slice %237 {offsets = [0, 64], sizes = [2, 32], strides = [1, 1]} : vector<2x96xf32> to vector<2x32xf32>
    %256 = arith.addf %255, %22 : vector<2x32xf32>
    %257 = arith.mulf %245, %256 : vector<2x32xf32>
    %258 = arith.addf %254, %257 : vector<2x32xf32>
    %259 = math.tanh %258 : vector<2x32xf32>
    %cst_61 = arith.constant 1.000000e+00 : f32
    %260 = vector.broadcast %cst_61 : f32 to vector<2x32xf32>
    %261 = arith.subf %260, %253 : vector<2x32xf32>
    %262 = arith.mulf %261, %259 : vector<2x32xf32>
    %263 = arith.mulf %253, %232 : vector<2x32xf32>
    %264 = arith.addf %262, %263 : vector<2x32xf32>
    %c6_i32 = arith.constant 6 : i32
    %265 = vector.broadcast %c6_i32 : i32 to vector<2x32xi32>
    %266 = arith.cmpi sgt, %25, %265 : vector<2x32xi32>
    %267 = arith.select %266, %264, %232 : vector<2x32xi1>, vector<2x32xf32>
    %cst_62 = arith.constant 0.000000e+00 : f32
    %268 = vector.broadcast %cst_62 : f32 to vector<2x32xf32>
    %269 = arith.select %266, %264, %268 : vector<2x32xi1>, vector<2x32xf32>
    %c12 = arith.constant 12 : index
    %c0_63 = arith.constant 0 : index
    %270 = vector.load %arg13[%c12, %c0_63] : memref<16x32xf32, #tpu.memory_space<vmem>>, vector<2x32xf32>
    tpu.vector_store %arg13[%c12, %c0_63], %269 {strides = array<i32>} : memref<16x32xf32, #tpu.memory_space<vmem>>, vector<2x32xf32>,
    %271 = vector.extract_strided_slice %12 {offsets = [14, 0], sizes = [2, 96], strides = [1, 1]} : vector<16x96xf32> to vector<2x96xf32>
    %cst_64 = arith.constant dense<0.000000e+00> : vector<2x96xf32>
    %272 = tpu.matmul %267, %19, %cst_64 {dimension_numbers = #tpu.dot_dimension_numbers<[1], [0], [0], [1], [0, 0, 1, 1], [], []>} : vector<2x32xf32>, vector<32x96xf32>, vector<2x96xf32> -> vector<2x96xf32>
    %273 = vector.extract_strided_slice %271 {offsets = [0, 0], sizes = [2, 32], strides = [1, 1]} : vector<2x96xf32> to vector<2x32xf32>
    %274 = vector.extract_strided_slice %272 {offsets = [0, 0], sizes = [2, 32], strides = [1, 1]} : vector<2x96xf32> to vector<2x32xf32>
    %275 = arith.addf %273, %274 : vector<2x32xf32>
    %276 = arith.negf %275 : vector<2x32xf32>
    %277 = math.exp %276 : vector<2x32xf32>
    %cst_65 = arith.constant 1.000000e+00 : f32
    %278 = vector.broadcast %cst_65 : f32 to vector<2x32xf32>
    %279 = arith.addf %278, %277 : vector<2x32xf32>
    %280 = arith.divf %278, %279 : vector<2x32xf32>
    %281 = vector.extract_strided_slice %271 {offsets = [0, 32], sizes = [2, 32], strides = [1, 1]} : vector<2x96xf32> to vector<2x32xf32>
    %282 = vector.extract_strided_slice %272 {offsets = [0, 32], sizes = [2, 32], strides = [1, 1]} : vector<2x96xf32> to vector<2x32xf32>
    %283 = arith.addf %281, %282 : vector<2x32xf32>
    %284 = arith.negf %283 : vector<2x32xf32>
    %285 = math.exp %284 : vector<2x32xf32>
    %cst_66 = arith.constant 1.000000e+00 : f32
    %286 = vector.broadcast %cst_66 : f32 to vector<2x32xf32>
    %287 = arith.addf %286, %285 : vector<2x32xf32>
    %288 = arith.divf %286, %287 : vector<2x32xf32>
    %289 = vector.extract_strided_slice %271 {offsets = [0, 64], sizes = [2, 32], strides = [1, 1]} : vector<2x96xf32> to vector<2x32xf32>
    %290 = vector.extract_strided_slice %272 {offsets = [0, 64], sizes = [2, 32], strides = [1, 1]} : vector<2x96xf32> to vector<2x32xf32>
    %291 = arith.addf %290, %22 : vector<2x32xf32>
    %292 = arith.mulf %280, %291 : vector<2x32xf32>
    %293 = arith.addf %289, %292 : vector<2x32xf32>
    %294 = math.tanh %293 : vector<2x32xf32>
    %cst_67 = arith.constant 1.000000e+00 : f32
    %295 = vector.broadcast %cst_67 : f32 to vector<2x32xf32>
    %296 = arith.subf %295, %288 : vector<2x32xf32>
    %297 = arith.mulf %296, %294 : vector<2x32xf32>
    %298 = arith.mulf %288, %267 : vector<2x32xf32>
    %299 = arith.addf %297, %298 : vector<2x32xf32>
    %c7_i32 = arith.constant 7 : i32
    %300 = vector.broadcast %c7_i32 : i32 to vector<2x32xi32>
    %301 = arith.cmpi sgt, %25, %300 : vector<2x32xi32>
    %cst_68 = arith.constant 0.000000e+00 : f32
    %302 = vector.broadcast %cst_68 : f32 to vector<2x32xf32>
    %303 = arith.select %301, %299, %302 : vector<2x32xi1>, vector<2x32xf32>
    %c14 = arith.constant 14 : index
    %c0_69 = arith.constant 0 : index
    %304 = vector.load %arg13[%c14, %c0_69] : memref<16x32xf32, #tpu.memory_space<vmem>>, vector<2x32xf32>
    tpu.vector_store %arg13[%c14, %c0_69], %303 {strides = array<i32>} : memref<16x32xf32, #tpu.memory_space<vmem>>, vector<2x32xf32>,
    %c0_70 = arith.constant 0 : index
    %c0_71 = arith.constant 0 : index
    %305 = vector.load %arg13[%c0_70, %c0_71] : memref<16x32xf32, #tpu.memory_space<vmem>>, vector<16x32xf32>
    %c0_72 = arith.constant 0 : index
    %c0_73 = arith.constant 0 : index
    %306 = vector.load %arg10[%c0_72, %c0_73] : memref<32x128xf32, #tpu.memory_space<vmem>>, vector<32x128xf32>
    %cst_74 = arith.constant dense<0.000000e+00> : vector<16x128xf32>
    %307 = tpu.matmul %305, %306, %cst_74 {dimension_numbers = #tpu.dot_dimension_numbers<[1], [0], [0], [1], [0, 0, 1, 1], [], []>} : vector<16x32xf32>, vector<32x128xf32>, vector<16x128xf32> -> vector<16x128xf32>
    %c0_75 = arith.constant 0 : index
    %c0_76 = arith.constant 0 : index
    %308 = vector.load %arg11[%c0_75, %c0_76] : memref<1x128xf32, #tpu.memory_space<vmem>>, vector<1x128xf32>
    %309 = vector.broadcast %308 : vector<1x128xf32> to vector<16x128xf32>
    %310 = arith.addf %307, %309 : vector<16x128xf32>
    %c0_77 = arith.constant 0 : index
    %c0_78 = arith.constant 0 : index
    %311 = vector.load %arg12[%c0_77, %c0_78] : memref<16x128xf32, #tpu.memory_space<vmem>>, vector<16x128xf32>
    tpu.vector_store %arg12[%c0_77, %c0_78], %310 {strides = array<i32>} : memref<16x128xf32, #tpu.memory_space<vmem>>, vector<16x128xf32>,
    return
  }
}

</mosaic_0001>

<llo_original>
// kernel: _fused_forward.1
$region0: #{_fused_forward.1}
  #allocation0 [shape = 'u32[]', space=smem, size = 0x4, offset = 0x4, fixed_abs, tag = 'smem constant byte address 0x4 - core index']
  #allocation1 [shape = 'u32[144,128]{1,0:T(1,128)}', space=vmem, size = 0x12000, scoped, tag = 'internal scratch']
  #allocation2 [shape = 'f32[16,32]{1,0:T(8,128)}', space=vmem, size = 0x2000, scoped, tag = 'scratch operand']
  %s0 = inlined_call_operand.vmem [shape: s32[16,1], index: 0, kind: input, shape index: {}]
  %s1 = inlined_call_operand.vmem [shape: s32[2,1], index: 1, kind: input, shape index: {}]
  %s2 = inlined_call_operand.vmem [shape: f32[2,16], index: 2, kind: input, shape index: {}]
  %s3 = inlined_call_operand.vmem [shape: f32[128,32], index: 3, kind: input, shape index: {}]
  %s4 = inlined_call_operand.vmem [shape: f32[16,32], index: 4, kind: input, shape index: {}]
  %s5 = inlined_call_operand.vmem [shape: f32[1,32], index: 5, kind: input, shape index: {}]
  %s6 = inlined_call_operand.vmem [shape: f32[32,96], index: 6, kind: input, shape index: {}]
  %s7 = inlined_call_operand.vmem [shape: f32[1,96], index: 7, kind: input, shape index: {}]
  %s8 = inlined_call_operand.vmem [shape: f32[32,96], index: 8, kind: input, shape index: {}]
  %s9 = inlined_call_operand.vmem [shape: f32[1,32], index: 9, kind: input, shape index: {}]
  %s10 = inlined_call_operand.vmem [shape: f32[32,128], index: 10, kind: input, shape index: {}]
  %s11 = inlined_call_operand.vmem [shape: f32[1,128], index: 11, kind: input, shape index: {}]
  %s12 = inlined_call_operand.vmem [shape: f32[16,128], index: 12, kind: output, shape index: {}]
  %s13 = sld [smem:[#allocation0]]
  $region58: #{_fused_forward.1} parent=0
    _
  %s15 = ssub.s32 1, %s13
  %s16 = scalar_select 0, %s15, %s13
  // Predicated region
  $region2: #{_fused_forward.1} parent=0 // pred_check
    _
  $region3: #{_fused_forward.1} parent=0 // pred_check_branch
    %18 = sbr.rel (0) target = $region5
  $region4: #{_fused_forward.1} parent=0 // pred_region
    _
  $region5: #{_fused_forward.1} parent=0 // pred_fallthru
    _
  // Predicated region
  $region6: #{_fused_forward.1} parent=0 // pred_check
    _
  $region7: #{_fused_forward.1} parent=0 // pred_check_branch
    %20 = sbr.rel (0) target = $region9
  $region8: #{_fused_forward.1} parent=0 // pred_region
    _
  $region9: #{_fused_forward.1} parent=0 // pred_fallthru
    _
  // Predicated region
  $region10: #{_fused_forward.1} parent=0 // pred_check
    _
  $region11: #{_fused_forward.1} parent=0 // pred_check_branch
    %22 = sbr.rel (0) target = $region13
  $region12: #{_fused_forward.1} parent=0 // pred_region
    _
  $region13: #{_fused_forward.1} parent=0 // pred_fallthru
    _
  // Predicated region
  $region14: #{_fused_forward.1} parent=0 // pred_check
    _
  $region15: #{_fused_forward.1} parent=0 // pred_check_branch
    %24 = sbr.rel (0) target = $region17
  $region16: #{_fused_forward.1} parent=0 // pred_region
    _
  $region17: #{_fused_forward.1} parent=0 // pred_fallthru
    _
  // Predicated region
  $region18: #{_fused_forward.1} parent=0 // pred_check
    _
  $region19: #{_fused_forward.1} parent=0 // pred_check_branch
    %26 = sbr.rel (0) target = $region21
  $region20: #{_fused_forward.1} parent=0 // pred_region
    _
  $region21: #{_fused_forward.1} parent=0 // pred_fallthru
    _
  // Predicated region
  $region22: #{_fused_forward.1} parent=0 // pred_check
    _
  $region23: #{_fused_forward.1} parent=0 // pred_check_branch
    %28 = sbr.rel (0) target = $region25
  $region24: #{_fused_forward.1} parent=0 // pred_region
    _
  $region25: #{_fused_forward.1} parent=0 // pred_fallthru
    _
  // Predicated region
  $region26: #{_fused_forward.1} parent=0 // pred_check
    _
  $region27: #{_fused_forward.1} parent=0 // pred_check_branch
    %30 = sbr.rel (0) target = $region29
  $region28: #{_fused_forward.1} parent=0 // pred_region
    _
  $region29: #{_fused_forward.1} parent=0 // pred_fallthru
    _
  // Predicated region
  $region30: #{_fused_forward.1} parent=0 // pred_check
    _
  $region31: #{_fused_forward.1} parent=0 // pred_check_branch
    %32 = sbr.rel (0) target = $region33
  $region32: #{_fused_forward.1} parent=0 // pred_region
    _
  $region33: #{_fused_forward.1} parent=0 // pred_fallthru
    _
  // Predicated region
  $region34: #{_fused_forward.1} parent=0 // pred_check
    _
  $region35: #{_fused_forward.1} parent=0 // pred_check_branch
    %34 = sbr.rel (0) target = $region37
  $region36: #{_fused_forward.1} parent=0 // pred_region
    _
  $region37: #{_fused_forward.1} parent=0 // pred_fallthru
    _
  // Predicated region
  $region38: #{_fused_forward.1} parent=0 // pred_check
    _
  $region39: #{_fused_forward.1} parent=0 // pred_check_branch
    %36 = sbr.rel (0) target = $region41
  $region40: #{_fused_forward.1} parent=0 // pred_region
    _
  $region41: #{_fused_forward.1} parent=0 // pred_fallthru
    _
  // Predicated region
  $region42: #{_fused_forward.1} parent=0 // pred_check
    _
  $region43: #{_fused_forward.1} parent=0 // pred_check_branch
    %38 = sbr.rel (0) target = $region45
  $region44: #{_fused_forward.1} parent=0 // pred_region
    _
  $region45: #{_fused_forward.1} parent=0 // pred_fallthru
    _
  // Predicated region
  $region46: #{_fused_forward.1} parent=0 // pred_check
    _
  $region47: #{_fused_forward.1} parent=0 // pred_check_branch
    %40 = sbr.rel (0) target = $region49
  $region48: #{_fused_forward.1} parent=0 // pred_region
    _
  $region49: #{_fused_forward.1} parent=0 // pred_fallthru
    _
  %v41 = vld [vmem:[%s0] sm:$0xff]
  %v42 = vld [vmem:[%s0 + $0x8] sm:$0xff]
  %v43 = vlaneseq
  %v44 = vand.u32 %v43, 127
  %45 = vset.pattern.permute.xlu0 0
  %46 = vperm.xlu0 %45, %v41
  %v47 = vpop.permute.xlu0 %46
  %48 = vset.pattern.permute.xlu0 0
  %49 = vperm.xlu0 %48, %v42
  %v50 = vpop.permute.xlu0 %49
  %vm51 = vcmp.eq.s32.totalorder %v47, %v44
  %vm52 = vcmp.eq.s32.totalorder %v50, %v44
  %v53 = vsel %vm51, 1, 0
  %v54 = vsel %vm52, 1, 0
  %v55 = vcvt.s32.f32 %v53
  %v56 = vcvt.s32.f32 %v54
  %v57 = vld [vmem:[%s3] sm:$0xff]
  %v58 = vld [vmem:[%s3 + $0x8] sm:$0xff]
  %v59 = vld [vmem:[%s3 + $0x10] sm:$0xff]
  %v60 = vld [vmem:[%s3 + $0x18] sm:$0xff]
  %v61 = vld [vmem:[%s3 + $0x20] sm:$0xff]
  %v62 = vld [vmem:[%s3 + $0x28] sm:$0xff]
  %v63 = vld [vmem:[%s3 + $0x30] sm:$0xff]
  %v64 = vld [vmem:[%s3 + $0x38] sm:$0xff]
  %v65 = vld [vmem:[%s3 + $0x40] sm:$0xff]
  %v66 = vld [vmem:[%s3 + $0x48] sm:$0xff]
  %v67 = vld [vmem:[%s3 + $0x50] sm:$0xff]
  %v68 = vld [vmem:[%s3 + $0x58] sm:$0xff]
  %v69 = vld [vmem:[%s3 + $0x60] sm:$0xff]
  %v70 = vld [vmem:[%s3 + $0x68] sm:$0xff]
  %v71 = vld [vmem:[%s3 + $0x70] sm:$0xff]
  %v72 = vld [vmem:[%s3 + $0x78] sm:$0xff]
  %73 = vmatprep.subr.mxu0 0.0
  %74 = vmatpush1.msra.mxu0 %v57
  %75 = vmatprep.subr.mxu0 0.0
  %76 = vmatpush1.msra.mxu0 %v58
  %77 = vmatprep.subr.mxu0 0.0
  %78 = vmatpush1.msra.mxu0 %v59
  %79 = vmatprep.subr.mxu0 0.0
  %80 = vmatpush1.msra.mxu0 %v60
  %81 = vmatprep.subr.mxu0 0.0
  %82 = vmatpush1.msra.mxu0 %v61
  %83 = vmatprep.subr.mxu0 0.0
  %84 = vmatpush1.msra.mxu0 %v62
  %85 = vmatprep.subr.mxu0 0.0
  %86 = vmatpush1.msra.mxu0 %v63
  %87 = vmatprep.subr.mxu0 0.0
  %88 = vmatpush1.msra.mxu0 %v64
  %89 = vmatprep.subr.mxu0 0.0
  %90 = vmatpush1.msra.mxu0 %v65
  %91 = vmatprep.subr.mxu0 0.0
  %92 = vmatpush1.msra.mxu0 %v66
  %93 = vmatprep.subr.mxu0 0.0
  %94 = vmatpush1.msra.mxu0 %v67
  %95 = vmatprep.subr.mxu0 0.0
  %96 = vmatpush1.msra.mxu0 %v68
  %97 = vmatprep.subr.mxu0 0.0
  %98 = vmatpush1.msra.mxu0 %v69
  %99 = vmatprep.subr.mxu0 0.0
  %100 = vmatpush1.msra.mxu0 %v70
  %101 = vmatprep.subr.mxu0 0.0
  %102 = vmatpush1.msra.mxu0 %v71
  %103 = vmatprep.subr.mxu0 0.0
  %104 = vmatpush1.msra.mxu0 %v72
  %105 = vmatprep.subr.mxu0 0.0
  %106 = vmatpush1.msra.mxu0 0.0
  %107 = vmatprep.subr.mxu0 0.0
  %108 = vmatpush1.msra.mxu0 0.0
  %109 = vmatprep.subr.mxu0 0.0
  %110 = vmatpush1.msra.mxu0 0.0
  %111 = vmatprep.subr.mxu0 0.0
  %112 = vmatpush1.msra.mxu0 0.0
  %113 = vmatprep.subr.mxu0 0.0
  %114 = vmatpush1.msra.mxu0 0.0
  %115 = vmatprep.subr.mxu0 0.0
  %116 = vmatpush1.msra.mxu0 0.0
  %117 = vmatprep.subr.mxu0 0.0
  %118 = vmatpush1.msra.mxu0 0.0
  %119 = vmatprep.subr.mxu0 0.0
  %120 = vmatpush1.msra.mxu0 0.0
  %121 = vmatprep.subr.mxu0 0.0
  %122 = vmatpush1.msra.mxu0 0.0
  %123 = vmatprep.subr.mxu0 0.0
  %124 = vmatpush1.msra.mxu0 0.0
  %125 = vmatprep.subr.mxu0 0.0
  %126 = vmatpush1.msra.mxu0 0.0
  %127 = vmatprep.subr.mxu0 0.0
  %128 = vmatpush1.msra.mxu0 0.0
  %129 = vmatprep.subr.mxu0 0.0
  %130 = vmatpush1.msra.mxu0 0.0
  %131 = vmatprep.subr.mxu0 0.0
  %132 = vmatpush1.msra.mxu0 0.0
  %133 = vmatprep.subr.mxu0 0.0
  %134 = vmatpush1.msra.mxu0 0.0
  %135 = vmatprep.subr.mxu0 0.0
  %136 = vmatpush1.msra.mxu0 0.0
  %137 = vmatprep.mubr.f32.mxu0 0.0
  %138 = vmatmul.mubr.f32.gmra.mrb[0].mxu0 %v55
  %v139 = vpop.f32.mrb[0].mxu0
  %v140 = vadd.f32 0.0, %v139
  %v141 = vpop.f32.mrb[0].mxu0
  %142 = vmatprep.mubr.f32.mxu0 0.0
  %143 = vmatmul.mubr.f32.gmra.mrb[0].mxu0 %v56
  %v144 = vpop.f32.mrb[0].mxu0
  %v145 = vadd.f32 0.0, %v144
  %v146 = vpop.f32.mrb[0].mxu0
  %147 = vdwg.mxu0
  %v148 = vld [vmem:[%s6] sm:$0xff]
  %v149 = vld [vmem:[%s6 + $0x8] sm:$0xff]
  %v150 = vld [vmem:[%s6 + $0x10] sm:$0xff]
  %v151 = vld [vmem:[%s6 + $0x18] sm:$0xff]
  %v152 = vld [vmem:[%s7] sm:$0x1]
  %v154 = vlaneseq
  %v155 = vshrl.u32 %v154, 7
  %v156 = vsub.s32 0, %v155
  %v157 = vrot.slane %v152, %v156
  %vm159 = vcmask 261120
  %v161 = vsel %vm159, %v140, 0
  %v164 = vsel %vm159, %v145, 0
  %166 = vmatprep.subr.mxu0 0.0
  %167 = vmatpush1.msra.mxu0 %v148
  %168 = vmatprep.subr.mxu0 0.0
  %169 = vmatpush1.msra.mxu0 %v149
  %170 = vmatprep.subr.mxu0 0.0
  %171 = vmatpush1.msra.mxu0 %v150
  %172 = vmatprep.subr.mxu0 0.0
  %173 = vmatpush1.msra.mxu0 %v151
  %174 = vmatprep.subr.mxu0 0.0
  %175 = vmatpush1.msra.mxu0 0.0
  %176 = vmatprep.subr.mxu0 0.0
  %177 = vmatpush1.msra.mxu0 0.0
  %178 = vmatprep.subr.mxu0 0.0
  %179 = vmatpush1.msra.mxu0 0.0
  %180 = vmatprep.subr.mxu0 0.0
  %181 = vmatpush1.msra.mxu0 0.0
  %182 = vmatprep.subr.mxu0 0.0
  %183 = vmatpush1.msra.mxu0 0.0
  %184 = vmatprep.subr.mxu0 0.0
  %185 = vmatpush1.msra.mxu0 0.0
  %186 = vmatprep.subr.mxu0 0.0
  %187 = vmatpush1.msra.mxu0 0.0
  %188 = vmatprep.subr.mxu0 0.0
  %189 = vmatpush1.msra.mxu0 0.0
  %190 = vmatprep.subr.mxu0 0.0
  %191 = vmatpush1.msra.mxu0 0.0
  %192 = vmatprep.subr.mxu0 0.0
  %193 = vmatpush1.msra.mxu0 0.0
  %194 = vmatprep.subr.mxu0 0.0
  %195 = vmatpush1.msra.mxu0 0.0
  %196 = vmatprep.subr.mxu0 0.0
  %197 = vmatpush1.msra.mxu0 0.0
  %198 = vmatprep.subr.mxu0 0.0
  %199 = vmatpush1.msra.mxu0 0.0
  %200 = vmatprep.subr.mxu0 0.0
  %201 = vmatpush1.msra.mxu0 0.0
  %202 = vmatprep.subr.mxu0 0.0
  %203 = vmatpush1.msra.mxu0 0.0
  %204 = vmatprep.subr.mxu0 0.0
  %205 = vmatpush1.msra.mxu0 0.0
  %206 = vmatprep.subr.mxu0 0.0
  %207 = vmatpush1.msra.mxu0 0.0
  %208 = vmatprep.subr.mxu0 0.0
  %209 = vmatpush1.msra.mxu0 0.0
  %210 = vmatprep.subr.mxu0 0.0
  %211 = vmatpush1.msra.mxu0 0.0
  %212 = vmatprep.subr.mxu0 0.0
  %213 = vmatpush1.msra.mxu0 0.0
  %214 = vmatprep.subr.mxu0 0.0
  %215 = vmatpush1.msra.mxu0 0.0
  %216 = vmatprep.subr.mxu0 0.0
  %217 = vmatpush1.msra.mxu0 0.0
  %218 = vmatprep.subr.mxu0 0.0
  %219 = vmatpush1.msra.mxu0 0.0
  %220 = vmatprep.subr.mxu0 0.0
  %221 = vmatpush1.msra.mxu0 0.0
  %222 = vmatprep.subr.mxu0 0.0
  %223 = vmatpush1.msra.mxu0 0.0
  %224 = vmatprep.subr.mxu0 0.0
  %225 = vmatpush1.msra.mxu0 0.0
  %226 = vmatprep.subr.mxu0 0.0
  %227 = vmatpush1.msra.mxu0 0.0
  %228 = vmatprep.subr.mxu0 0.0
  %229 = vmatpush1.msra.mxu0 0.0
  %230 = vmatprep.mubr.f32.mxu0 0.0
  %231 = vmatmul.mubr.f32.gmra.mrb[0].mxu0 %v161
  %v232 = vpop.f32.mrb[0].mxu0
  %v233 = vadd.f32 %v157, %v232
  %v234 = vpop.f32.mrb[0].mxu0
  %235 = vmatprep.mubr.f32.mxu0 0.0
  %236 = vmatmul.mubr.f32.gmra.mrb[0].mxu0 %v164
  %v237 = vpop.f32.mrb[0].mxu0
  %v238 = vadd.f32 %v157, %v237
  %v239 = vpop.f32.mrb[0].mxu0
  %240 = vdwg.mxu0
  %v241 = vld [vmem:[%s2] sm:$0x3]
  %v242 = vld [vmem:[%s4] sm:$0xff]
  %v243 = vld [vmem:[%s4 + $0x8] sm:$0xff]
  %v244 = vld [vmem:[%s5] sm:$0x1]
  %v246 = vlaneseq
  %v247 = vshrl.u32 %v246, 7
  %v248 = vsub.s32 0, %v247
  %v249 = vrot.slane %v244, %v248
  %vm251 = vcmask 130048
  %v253 = vsel %vm251, %v241, 0
  %255 = vmatprep.subr.mxu0 0.0
  %256 = vmatpush1.msra.mxu0 %v242
  %257 = vmatprep.subr.mxu0 0.0
  %258 = vmatpush1.msra.mxu0 %v243
  %259 = vmatprep.subr.mxu0 0.0
  %260 = vmatpush1.msra.mxu0 0.0
  %261 = vmatprep.subr.mxu0 0.0
  %262 = vmatpush1.msra.mxu0 0.0
  %263 = vmatprep.subr.mxu0 0.0
  %264 = vmatpush1.msra.mxu0 0.0
  %265 = vmatprep.subr.mxu0 0.0
  %266 = vmatpush1.msra.mxu0 0.0
  %267 = vmatprep.subr.mxu0 0.0
  %268 = vmatpush1.msra.mxu0 0.0
  %269 = vmatprep.subr.mxu0 0.0
  %270 = vmatpush1.msra.mxu0 0.0
  %271 = vmatprep.subr.mxu0 0.0
  %272 = vmatpush1.msra.mxu0 0.0
  %273 = vmatprep.subr.mxu0 0.0
  %274 = vmatpush1.msra.mxu0 0.0
  %275 = vmatprep.subr.mxu0 0.0
  %276 = vmatpush1.msra.mxu0 0.0
  %277 = vmatprep.subr.mxu0 0.0
  %278 = vmatpush1.msra.mxu0 0.0
  %279 = vmatprep.subr.mxu0 0.0
  %280 = vmatpush1.msra.mxu0 0.0
  %281 = vmatprep.subr.mxu0 0.0
  %282 = vmatpush1.msra.mxu0 0.0
  %283 = vmatprep.subr.mxu0 0.0
  %284 = vmatpush1.msra.mxu0 0.0
  %285 = vmatprep.subr.mxu0 0.0
  %286 = vmatpush1.msra.mxu0 0.0
  %287 = vmatprep.subr.mxu0 0.0
  %288 = vmatpush1.msra.mxu0 0.0
  %289 = vmatprep.subr.mxu0 0.0
  %290 = vmatpush1.msra.mxu0 0.0
  %291 = vmatprep.subr.mxu0 0.0
  %292 = vmatpush1.msra.mxu0 0.0
  %293 = vmatprep.subr.mxu0 0.0
  %294 = vmatpush1.msra.mxu0 0.0
  %295 = vmatprep.subr.mxu0 0.0
  %296 = vmatpush1.msra.mxu0 0.0
  %297 = vmatprep.subr.mxu0 0.0
  %298 = vmatpush1.msra.mxu0 0.0
  %299 = vmatprep.subr.mxu0 0.0
  %300 = vmatpush1.msra.mxu0 0.0
  %301 = vmatprep.subr.mxu0 0.0
  %302 = vmatpush1.msra.mxu0 0.0
  %303 = vmatprep.subr.mxu0 0.0
  %304 = vmatpush1.msra.mxu0 0.0
  %305 = vmatprep.subr.mxu0 0.0
  %306 = vmatpush1.msra.mxu0 0.0
  %307 = vmatprep.subr.mxu0 0.0
  %308 = vmatpush1.msra.mxu0 0.0
  %309 = vmatprep.subr.mxu0 0.0
  %310 = vmatpush1.msra.mxu0 0.0
  %311 = vmatprep.subr.mxu0 0.0
  %312 = vmatpush1.msra.mxu0 0.0
  %313 = vmatprep.subr.mxu0 0.0
  %314 = vmatpush1.msra.mxu0 0.0
  %315 = vmatprep.subr.mxu0 0.0
  %316 = vmatpush1.msra.mxu0 0.0
  %317 = vmatprep.subr.mxu0 0.0
  %318 = vmatpush1.msra.mxu0 0.0
  %319 = vmatprep.mubr.f32.mxu0 0.0
  %320 = vmatmul.mubr.f32.gmra.mrb[0].mxu0 %v253
  %v321 = vpop.f32.mrb[0].mxu0
  %v322 = vadd.f32 %v249, %v321
  %v323 = vpop.f32.mrb[0].mxu0
  %324 = vdwg.mxu0
  %v325 = vld [vmem:[%s8] sm:$0xff]
  %v326 = vld [vmem:[%s8 + $0x8] sm:$0xff]
  %v327 = vld [vmem:[%s8 + $0x10] sm:$0xff]
  %v328 = vld [vmem:[%s8 + $0x18] sm:$0xff]
  %v329 = vld [vmem:[%s9] sm:$0x1]
  %v331 = vlaneseq
  %v332 = vshrl.u32 %v331, 7
  %v333 = vsub.s32 0, %v332
  %v334 = vrot.slane %v329, %v333
  %v335 = vld [vmem:[%s1] sm:$0x3]
  %336 = vset.pattern.permute.xlu0 0
  %337 = vperm.xlu0 %336, %v335
  %v338 = vpop.permute.xlu0 %337
  %v340 = vsel %vm159, %v322, 0
  %342 = vmatprep.subr.mxu0 0.0
  %343 = vmatpush1.msra.mxu0 %v325
  %344 = vmatprep.subr.mxu0 0.0
  %345 = vmatpush1.msra.mxu0 %v326
  %346 = vmatprep.subr.mxu0 0.0
  %347 = vmatpush1.msra.mxu0 %v327
  %348 = vmatprep.subr.mxu0 0.0
  %349 = vmatpush1.msra.mxu0 %v328
  %350 = vmatprep.subr.mxu0 0.0
  %351 = vmatpush1.msra.mxu0 0.0
  %352 = vmatprep.subr.mxu0 0.0
  %353 = vmatpush1.msra.mxu0 0.0
  %354 = vmatprep.subr.mxu0 0.0
  %355 = vmatpush1.msra.mxu0 0.0
  %356 = vmatprep.subr.mxu0 0.0
  %357 = vmatpush1.msra.mxu0 0.0
  %358 = vmatprep.subr.mxu0 0.0
  %359 = vmatpush1.msra.mxu0 0.0
  %360 = vmatprep.subr.mxu0 0.0
  %361 = vmatpush1.msra.mxu0 0.0
  %362 = vmatprep.subr.mxu0 0.0
  %363 = vmatpush1.msra.mxu0 0.0
  %364 = vmatprep.subr.mxu0 0.0
  %365 = vmatpush1.msra.mxu0 0.0
  %366 = vmatprep.subr.mxu0 0.0
  %367 = vmatpush1.msra.mxu0 0.0
  %368 = vmatprep.subr.mxu0 0.0
  %369 = vmatpush1.msra.mxu0 0.0
  %370 = vmatprep.subr.mxu0 0.0
  %371 = vmatpush1.msra.mxu0 0.0
  %372 = vmatprep.subr.mxu0 0.0
  %373 = vmatpush1.msra.mxu0 0.0
  %374 = vmatprep.subr.mxu0 0.0
  %375 = vmatpush1.msra.mxu0 0.0
  %376 = vmatprep.subr.mxu0 0.0
  %377 = vmatpush1.msra.mxu0 0.0
  %378 = vmatprep.subr.mxu0 0.0
  %379 = vmatpush1.msra.mxu0 0.0
  %380 = vmatprep.subr.mxu0 0.0
  %381 = vmatpush1.msra.mxu0 0.0
  %382 = vmatprep.subr.mxu0 0.0
  %383 = vmatpush1.msra.mxu0 0.0
  %384 = vmatprep.subr.mxu0 0.0
  %385 = vmatpush1.msra.mxu0 0.0
  %386 = vmatprep.subr.mxu0 0.0
  %387 = vmatpush1.msra.mxu0 0.0
  %388 = vmatprep.subr.mxu0 0.0
  %389 = vmatpush1.msra.mxu0 0.0
  %390 = vmatprep.subr.mxu0 0.0
  %391 = vmatpush1.msra.mxu0 0.0
  %392 = vmatprep.subr.mxu0 0.0
  %393 = vmatpush1.msra.mxu0 0.0
  %394 = vmatprep.subr.mxu0 0.0
  %395 = vmatpush1.msra.mxu0 0.0
  %396 = vmatprep.subr.mxu0 0.0
  %397 = vmatpush1.msra.mxu0 0.0
  %398 = vmatprep.subr.mxu0 0.0
  %399 = vmatpush1.msra.mxu0 0.0
  %400 = vmatprep.subr.mxu0 0.0
  %401 = vmatpush1.msra.mxu0 0.0
  %402 = vmatprep.subr.mxu0 0.0
  %403 = vmatpush1.msra.mxu0 0.0
  %404 = vmatprep.subr.mxu0 0.0
  %405 = vmatpush1.msra.mxu0 0.0
  %406 = vmatprep.mubr.f32.mxu0 0.0
  %407 = vmatmul.mubr.f32.gmra.mrb[0].mxu0 %v340
  %v408 = vpop.f32.mrb[0].mxu0
  %v409 = vadd.f32 0.0, %v408
  %v410 = vpop.f32.mrb[0].mxu0
  %411 = vdwg.mxu0
  %v412 = vadd.f32 %v233, %v409
  %v413 = vxor.u32 %v412, 2147483648
  %v414 = vmul.f32 %v413, 1.442695
  %v415 = vpow.pop %v414
  %v416 = vadd.f32 %v415, 1.0
  %v417 = vrcp.pop %v416
  %v418 = vmul.f32 1.0, %v417
  %419 = vrot.lane.b32.xlu0 %v334, 64
  %v420 = vpop.permute.xlu0 %419
  %v422 = vadd.f32 %v409, %v420
  %424 = vrot.lane.b32.xlu0 %v422, 64
  %v425 = vpop.permute.xlu0 %424
  %v427 = vmul.f32 %v418, %v425
  %429 = vrot.lane.b32.xlu0 %v427, 64
  %v430 = vpop.permute.xlu0 %429
  %v432 = vadd.f32 %v233, %v430
  %v433 = vtanh.pop %v432
  %v434 = vsub.f32 1.0, %v418
  %436 = vrot.lane.b32.xlu0 %v433, 96
  %v437 = vpop.permute.xlu0 %436
  %v439 = vmul.f32 %v434, %v437
  %440 = vrot.lane.b32.xlu0 %v322, 32
  %v441 = vpop.permute.xlu0 %440
  %v443 = vmul.f32 %v418, %v441
  %v444 = vadd.f32 %v439, %v443
  %vm445 = vcmp.gt.s32.totalorder %v338, 0
  %v446 = vsel %vm445, %v444, %v441
  %v447 = vsel %vm445, %v444, 0.0
  %449 = vrot.lane.b32.xlu0 %v447, 96
  %v450 = vpop.permute.xlu0 %449
  %vm452 = vcmask 254976
  %453 = vst.msk [vmem:[#allocation2] sm:$0x3] %vm452, %v450
  %455 = vrot.lane.b32.xlu0 %v446, 96
  %v456 = vpop.permute.xlu0 %455
  %v457 = vsel %vm159, %v456, 0
  %459 = vmatprep.subr.mxu0 0.0
  %460 = vmatpush1.msra.mxu0 %v325
  %461 = vmatprep.subr.mxu0 0.0
  %462 = vmatpush1.msra.mxu0 %v326
  %463 = vmatprep.subr.mxu0 0.0
  %464 = vmatpush1.msra.mxu0 %v327
  %465 = vmatprep.subr.mxu0 0.0
  %466 = vmatpush1.msra.mxu0 %v328
  %467 = vmatprep.subr.mxu0 0.0
  %468 = vmatpush1.msra.mxu0 0.0
  %469 = vmatprep.subr.mxu0 0.0
  %470 = vmatpush1.msra.mxu0 0.0
  %471 = vmatprep.subr.mxu0 0.0
  %472 = vmatpush1.msra.mxu0 0.0
  %473 = vmatprep.subr.mxu0 0.0
  %474 = vmatpush1.msra.mxu0 0.0
  %475 = vmatprep.subr.mxu0 0.0
  %476 = vmatpush1.msra.mxu0 0.0
  %477 = vmatprep.subr.mxu0 0.0
  %478 = vmatpush1.msra.mxu0 0.0
  %479 = vmatprep.subr.mxu0 0.0
  %480 = vmatpush1.msra.mxu0 0.0
  %481 = vmatprep.subr.mxu0 0.0
  %482 = vmatpush1.msra.mxu0 0.0
  %483 = vmatprep.subr.mxu0 0.0
  %484 = vmatpush1.msra.mxu0 0.0
  %485 = vmatprep.subr.mxu0 0.0
  %486 = vmatpush1.msra.mxu0 0.0
  %487 = vmatprep.subr.mxu0 0.0
  %488 = vmatpush1.msra.mxu0 0.0
  %489 = vmatprep.subr.mxu0 0.0
  %490 = vmatpush1.msra.mxu0 0.0
  %491 = vmatprep.subr.mxu0 0.0
  %492 = vmatpush1.msra.mxu0 0.0
  %493 = vmatprep.subr.mxu0 0.0
  %494 = vmatpush1.msra.mxu0 0.0
  %495 = vmatprep.subr.mxu0 0.0
  %496 = vmatpush1.msra.mxu0 0.0
  %497 = vmatprep.subr.mxu0 0.0
  %498 = vmatpush1.msra.mxu0 0.0
  %499 = vmatprep.subr.mxu0 0.0
  %500 = vmatpush1.msra.mxu0 0.0
  %501 = vmatprep.subr.mxu0 0.0
  %502 = vmatpush1.msra.mxu0 0.0
  %503 = vmatprep.subr.mxu0 0.0
  %504 = vmatpush1.msra.mxu0 0.0
  %505 = vmatprep.subr.mxu0 0.0
  %506 = vmatpush1.msra.mxu0 0.0
  %507 = vmatprep.subr.mxu0 0.0
  %508 = vmatpush1.msra.mxu0 0.0
  %509 = vmatprep.subr.mxu0 0.0
  %510 = vmatpush1.msra.mxu0 0.0
  %511 = vmatprep.subr.mxu0 0.0
  %512 = vmatpush1.msra.mxu0 0.0
  %513 = vmatprep.subr.mxu0 0.0
  %514 = vmatpush1.msra.mxu0 0.0
  %515 = vmatprep.subr.mxu0 0.0
  %516 = vmatpush1.msra.mxu0 0.0
  %517 = vmatprep.subr.mxu0 0.0
  %518 = vmatpush1.msra.mxu0 0.0
  %519 = vmatprep.subr.mxu0 0.0
  %520 = vmatpush1.msra.mxu0 0.0
  %521 = vmatprep.subr.mxu0 0.0
  %522 = vmatpush1.msra.mxu0 0.0
  %523 = vmatprep.mubr.f32.mxu0 0.0
  %524 = vmatmul.mubr.f32.gmra.mrb[0].mxu0 %v457
  %v525 = vpop.f32.mrb[0].mxu0
  %v526 = vadd.f32 0.0, %v525
  %v527 = vpop.f32.mrb[0].mxu0
  %528 = vdwg.mxu0
  %v530 = vrot.slane %v526, 6
  %v532 = vadd.f32 %v233, %v530
  %v533 = vxor.u32 %v532, 2147483648
  %v534 = vmul.f32 %v533, 1.442695
  %v535 = vpow.pop %v534
  %v536 = vadd.f32 %v535, 1.0
  %v537 = vrcp.pop %v536
  %v538 = vmul.f32 1.0, %v537
  %v539 = vadd.f32 %v526, %v420
  %v541 = vrot.slane %v539, 6
  %542 = vrot.lane.b32.xlu0 %v541, 64
  %v543 = vpop.permute.xlu0 %542
  %v545 = vmul.f32 %v538, %v543
  %547 = vrot.lane.b32.xlu0 %v545, 64
  %v548 = vpop.permute.xlu0 %547
  %v550 = vadd.f32 %v233, %v548
  %v551 = vtanh.pop %v550
  %v552 = vsub.f32 1.0, %v538
  %554 = vrot.lane.b32.xlu0 %v551, 96
  %v555 = vpop.permute.xlu0 %554
  %v557 = vmul.f32 %v552, %v555
  %v558 = vrot.slane %v446, 6
  %v560 = vmul.f32 %v538, %v558
  %v561 = vadd.f32 %v557, %v560
  %vm562 = vcmp.gt.s32.totalorder %v338, 1
  %v564 = vrot.slane %v561, 2
  %565 = vrot.lane.b32.xlu0 %v564, 96
  %v566 = vpop.permute.xlu0 %565
  %v569 = vsel %vm562, %v566, %v456
  %v570 = vsel %vm562, %v566, 0.0
  %571 = vst.msk [vmem:[#allocation2 + $0x2] sm:$0x3] %vm452, %v570
  %v573 = vsel %vm159, %v569, 0
  %575 = vmatprep.subr.mxu0 0.0
  %576 = vmatpush1.msra.mxu0 %v325
  %577 = vmatprep.subr.mxu0 0.0
  %578 = vmatpush1.msra.mxu0 %v326
  %579 = vmatprep.subr.mxu0 0.0
  %580 = vmatpush1.msra.mxu0 %v327
  %581 = vmatprep.subr.mxu0 0.0
  %582 = vmatpush1.msra.mxu0 %v328
  %583 = vmatprep.subr.mxu0 0.0
  %584 = vmatpush1.msra.mxu0 0.0
  %585 = vmatprep.subr.mxu0 0.0
  %586 = vmatpush1.msra.mxu0 0.0
  %587 = vmatprep.subr.mxu0 0.0
  %588 = vmatpush1.msra.mxu0 0.0
  %589 = vmatprep.subr.mxu0 0.0
  %590 = vmatpush1.msra.mxu0 0.0
  %591 = vmatprep.subr.mxu0 0.0
  %592 = vmatpush1.msra.mxu0 0.0
  %593 = vmatprep.subr.mxu0 0.0
  %594 = vmatpush1.msra.mxu0 0.0
  %595 = vmatprep.subr.mxu0 0.0
  %596 = vmatpush1.msra.mxu0 0.0
  %597 = vmatprep.subr.mxu0 0.0
  %598 = vmatpush1.msra.mxu0 0.0
  %599 = vmatprep.subr.mxu0 0.0
  %600 = vmatpush1.msra.mxu0 0.0
  %601 = vmatprep.subr.mxu0 0.0
  %602 = vmatpush1.msra.mxu0 0.0
  %603 = vmatprep.subr.mxu0 0.0
  %604 = vmatpush1.msra.mxu0 0.0
  %605 = vmatprep.subr.mxu0 0.0
  %606 = vmatpush1.msra.mxu0 0.0
  %607 = vmatprep.subr.mxu0 0.0
  %608 = vmatpush1.msra.mxu0 0.0
  %609 = vmatprep.subr.mxu0 0.0
  %610 = vmatpush1.msra.mxu0 0.0
  %611 = vmatprep.subr.mxu0 0.0
  %612 = vmatpush1.msra.mxu0 0.0
  %613 = vmatprep.subr.mxu0 0.0
  %614 = vmatpush1.msra.mxu0 0.0
  %615 = vmatprep.subr.mxu0 0.0
  %616 = vmatpush1.msra.mxu0 0.0
  %617 = vmatprep.subr.mxu0 0.0
  %618 = vmatpush1.msra.mxu0 0.0
  %619 = vmatprep.subr.mxu0 0.0
  %620 = vmatpush1.msra.mxu0 0.0
  %621 = vmatprep.subr.mxu0 0.0
  %622 = vmatpush1.msra.mxu0 0.0
  %623 = vmatprep.subr.mxu0 0.0
  %624 = vmatpush1.msra.mxu0 0.0
  %625 = vmatprep.subr.mxu0 0.0
  %626 = vmatpush1.msra.mxu0 0.0
  %627 = vmatprep.subr.mxu0 0.0
  %628 = vmatpush1.msra.mxu0 0.0
  %629 = vmatprep.subr.mxu0 0.0
  %630 = vmatpush1.msra.mxu0 0.0
  %631 = vmatprep.subr.mxu0 0.0
  %632 = vmatpush1.msra.mxu0 0.0
  %633 = vmatprep.subr.mxu0 0.0
  %634 = vmatpush1.msra.mxu0 0.0
  %635 = vmatprep.subr.mxu0 0.0
  %636 = vmatpush1.msra.mxu0 0.0
  %637 = vmatprep.subr.mxu0 0.0
  %638 = vmatpush1.msra.mxu0 0.0
  %639 = vmatprep.mubr.f32.mxu0 0.0
  %640 = vmatmul.mubr.f32.gmra.mrb[0].mxu0 %v573
  %v641 = vpop.f32.mrb[0].mxu0
  %v642 = vadd.f32 0.0, %v641
  %v643 = vpop.f32.mrb[0].mxu0
  %644 = vdwg.mxu0
  %v646 = vrot.slane %v642, 4
  %v648 = vadd.f32 %v233, %v646
  %v649 = vxor.u32 %v648, 2147483648
  %v650 = vmul.f32 %v649, 1.442695
  %v651 = vpow.pop %v650
  %v652 = vadd.f32 %v651, 1.0
  %v653 = vrcp.pop %v652
  %v654 = vmul.f32 1.0, %v653
  %v655 = vadd.f32 %v642, %v420
  %v657 = vrot.slane %v655, 4
  %658 = vrot.lane.b32.xlu0 %v657, 64
  %v659 = vpop.permute.xlu0 %658
  %v661 = vmul.f32 %v654, %v659
  %663 = vrot.lane.b32.xlu0 %v661, 64
  %v664 = vpop.permute.xlu0 %663
  %v666 = vadd.f32 %v233, %v664
  %v667 = vtanh.pop %v666
  %v668 = vsub.f32 1.0, %v654
  %670 = vrot.lane.b32.xlu0 %v667, 96
  %v671 = vpop.permute.xlu0 %670
  %v673 = vmul.f32 %v668, %v671
  %v674 = vrot.slane %v569, 4
  %675 = vrot.lane.b32.xlu0 %v674, 32
  %v676 = vpop.permute.xlu0 %675
  %v678 = vmul.f32 %v654, %v676
  %v679 = vadd.f32 %v673, %v678
  %vm680 = vcmp.gt.s32.totalorder %v338, 2
  %v682 = vrot.slane %v679, 4
  %683 = vrot.lane.b32.xlu0 %v682, 96
  %v684 = vpop.permute.xlu0 %683
  %v686 = vsel %vm680, %v684, %v569
  %v687 = vsel %vm680, %v684, 0.0
  %688 = vst.msk [vmem:[#allocation2 + $0x4] sm:$0x3] %vm452, %v687
  %v690 = vsel %vm159, %v686, 0
  %692 = vmatprep.subr.mxu0 0.0
  %693 = vmatpush1.msra.mxu0 %v325
  %694 = vmatprep.subr.mxu0 0.0
  %695 = vmatpush1.msra.mxu0 %v326
  %696 = vmatprep.subr.mxu0 0.0
  %697 = vmatpush1.msra.mxu0 %v327
  %698 = vmatprep.subr.mxu0 0.0
  %699 = vmatpush1.msra.mxu0 %v328
  %700 = vmatprep.subr.mxu0 0.0
  %701 = vmatpush1.msra.mxu0 0.0
  %702 = vmatprep.subr.mxu0 0.0
  %703 = vmatpush1.msra.mxu0 0.0
  %704 = vmatprep.subr.mxu0 0.0
  %705 = vmatpush1.msra.mxu0 0.0
  %706 = vmatprep.subr.mxu0 0.0
  %707 = vmatpush1.msra.mxu0 0.0
  %708 = vmatprep.subr.mxu0 0.0
  %709 = vmatpush1.msra.mxu0 0.0
  %710 = vmatprep.subr.mxu0 0.0
  %711 = vmatpush1.msra.mxu0 0.0
  %712 = vmatprep.subr.mxu0 0.0
  %713 = vmatpush1.msra.mxu0 0.0
  %714 = vmatprep.subr.mxu0 0.0
  %715 = vmatpush1.msra.mxu0 0.0
  %716 = vmatprep.subr.mxu0 0.0
  %717 = vmatpush1.msra.mxu0 0.0
  %718 = vmatprep.subr.mxu0 0.0
  %719 = vmatpush1.msra.mxu0 0.0
  %720 = vmatprep.subr.mxu0 0.0
  %721 = vmatpush1.msra.mxu0 0.0
  %722 = vmatprep.subr.mxu0 0.0
  %723 = vmatpush1.msra.mxu0 0.0
  %724 = vmatprep.subr.mxu0 0.0
  %725 = vmatpush1.msra.mxu0 0.0
  %726 = vmatprep.subr.mxu0 0.0
  %727 = vmatpush1.msra.mxu0 0.0
  %728 = vmatprep.subr.mxu0 0.0
  %729 = vmatpush1.msra.mxu0 0.0
  %730 = vmatprep.subr.mxu0 0.0
  %731 = vmatpush1.msra.mxu0 0.0
  %732 = vmatprep.subr.mxu0 0.0
  %733 = vmatpush1.msra.mxu0 0.0
  %734 = vmatprep.subr.mxu0 0.0
  %735 = vmatpush1.msra.mxu0 0.0
  %736 = vmatprep.subr.mxu0 0.0
  %737 = vmatpush1.msra.mxu0 0.0
  %738 = vmatprep.subr.mxu0 0.0
  %739 = vmatpush1.msra.mxu0 0.0
  %740 = vmatprep.subr.mxu0 0.0
  %741 = vmatpush1.msra.mxu0 0.0
  %742 = vmatprep.subr.mxu0 0.0
  %743 = vmatpush1.msra.mxu0 0.0
  %744 = vmatprep.subr.mxu0 0.0
  %745 = vmatpush1.msra.mxu0 0.0
  %746 = vmatprep.subr.mxu0 0.0
  %747 = vmatpush1.msra.mxu0 0.0
  %748 = vmatprep.subr.mxu0 0.0
  %749 = vmatpush1.msra.mxu0 0.0
  %750 = vmatprep.subr.mxu0 0.0
  %751 = vmatpush1.msra.mxu0 0.0
  %752 = vmatprep.subr.mxu0 0.0
  %753 = vmatpush1.msra.mxu0 0.0
  %754 = vmatprep.subr.mxu0 0.0
  %755 = vmatpush1.msra.mxu0 0.0
  %756 = vmatprep.mubr.f32.mxu0 0.0
  %757 = vmatmul.mubr.f32.gmra.mrb[0].mxu0 %v690
  %v758 = vpop.f32.mrb[0].mxu0
  %v759 = vadd.f32 0.0, %v758
  %v760 = vpop.f32.mrb[0].mxu0
  %761 = vdwg.mxu0
  %v763 = vrot.slane %v759, 2
  %v765 = vadd.f32 %v233, %v763
  %v766 = vxor.u32 %v765, 2147483648
  %v767 = vmul.f32 %v766, 1.442695
  %v768 = vpow.pop %v767
  %v769 = vadd.f32 %v768, 1.0
  %v770 = vrcp.pop %v769
  %v771 = vmul.f32 1.0, %v770
  %v772 = vadd.f32 %v759, %v420
  %v774 = vrot.slane %v772, 2
  %775 = vrot.lane.b32.xlu0 %v774, 64
  %v776 = vpop.permute.xlu0 %775
  %v778 = vmul.f32 %v771, %v776
  %780 = vrot.lane.b32.xlu0 %v778, 64
  %v781 = vpop.permute.xlu0 %780
  %v783 = vadd.f32 %v233, %v781
  %v784 = vtanh.pop %v783
  %v785 = vsub.f32 1.0, %v771
  %787 = vrot.lane.b32.xlu0 %v784, 96
  %v788 = vpop.permute.xlu0 %787
  %v790 = vmul.f32 %v785, %v788
  %v791 = vrot.slane %v686, 2
  %792 = vrot.lane.b32.xlu0 %v791, 32
  %v793 = vpop.permute.xlu0 %792
  %v795 = vmul.f32 %v771, %v793
  %v796 = vadd.f32 %v790, %v795
  %vm797 = vcmp.gt.s32.totalorder %v338, 3
  %v799 = vrot.slane %v796, 6
  %800 = vrot.lane.b32.xlu0 %v799, 96
  %v801 = vpop.permute.xlu0 %800
  %v803 = vsel %vm797, %v801, %v686
  %v804 = vsel %vm797, %v801, 0.0
  %805 = vst.msk [vmem:[#allocation2 + $0x6] sm:$0x3] %vm452, %v804
  %v807 = vsel %vm159, %v803, 0
  %809 = vmatprep.subr.mxu0 0.0
  %810 = vmatpush1.msra.mxu0 %v325
  %811 = vmatprep.subr.mxu0 0.0
  %812 = vmatpush1.msra.mxu0 %v326
  %813 = vmatprep.subr.mxu0 0.0
  %814 = vmatpush1.msra.mxu0 %v327
  %815 = vmatprep.subr.mxu0 0.0
  %816 = vmatpush1.msra.mxu0 %v328
  %817 = vmatprep.subr.mxu0 0.0
  %818 = vmatpush1.msra.mxu0 0.0
  %819 = vmatprep.subr.mxu0 0.0
  %820 = vmatpush1.msra.mxu0 0.0
  %821 = vmatprep.subr.mxu0 0.0
  %822 = vmatpush1.msra.mxu0 0.0
  %823 = vmatprep.subr.mxu0 0.0
  %824 = vmatpush1.msra.mxu0 0.0
  %825 = vmatprep.subr.mxu0 0.0
  %826 = vmatpush1.msra.mxu0 0.0
  %827 = vmatprep.subr.mxu0 0.0
  %828 = vmatpush1.msra.mxu0 0.0
  %829 = vmatprep.subr.mxu0 0.0
  %830 = vmatpush1.msra.mxu0 0.0
  %831 = vmatprep.subr.mxu0 0.0
  %832 = vmatpush1.msra.mxu0 0.0
  %833 = vmatprep.subr.mxu0 0.0
  %834 = vmatpush1.msra.mxu0 0.0
  %835 = vmatprep.subr.mxu0 0.0
  %836 = vmatpush1.msra.mxu0 0.0
  %837 = vmatprep.subr.mxu0 0.0
  %838 = vmatpush1.msra.mxu0 0.0
  %839 = vmatprep.subr.mxu0 0.0
  %840 = vmatpush1.msra.mxu0 0.0
  %841 = vmatprep.subr.mxu0 0.0
  %842 = vmatpush1.msra.mxu0 0.0
  %843 = vmatprep.subr.mxu0 0.0
  %844 = vmatpush1.msra.mxu0 0.0
  %845 = vmatprep.subr.mxu0 0.0
  %846 = vmatpush1.msra.mxu0 0.0
  %847 = vmatprep.subr.mxu0 0.0
  %848 = vmatpush1.msra.mxu0 0.0
  %849 = vmatprep.subr.mxu0 0.0
  %850 = vmatpush1.msra.mxu0 0.0
  %851 = vmatprep.subr.mxu0 0.0
  %852 = vmatpush1.msra.mxu0 0.0
  %853 = vmatprep.subr.mxu0 0.0
  %854 = vmatpush1.msra.mxu0 0.0
  %855 = vmatprep.subr.mxu0 0.0
  %856 = vmatpush1.msra.mxu0 0.0
  %857 = vmatprep.subr.mxu0 0.0
  %858 = vmatpush1.msra.mxu0 0.0
  %859 = vmatprep.subr.mxu0 0.0
  %860 = vmatpush1.msra.mxu0 0.0
  %861 = vmatprep.subr.mxu0 0.0
  %862 = vmatpush1.msra.mxu0 0.0
  %863 = vmatprep.subr.mxu0 0.0
  %864 = vmatpush1.msra.mxu0 0.0
  %865 = vmatprep.subr.mxu0 0.0
  %866 = vmatpush1.msra.mxu0 0.0
  %867 = vmatprep.subr.mxu0 0.0
  %868 = vmatpush1.msra.mxu0 0.0
  %869 = vmatprep.subr.mxu0 0.0
  %870 = vmatpush1.msra.mxu0 0.0
  %871 = vmatprep.subr.mxu0 0.0
  %872 = vmatpush1.msra.mxu0 0.0
  %873 = vmatprep.mubr.f32.mxu0 0.0
  %874 = vmatmul.mubr.f32.gmra.mrb[0].mxu0 %v807
  %v875 = vpop.f32.mrb[0].mxu0
  %v876 = vadd.f32 0.0, %v875
  %v877 = vpop.f32.mrb[0].mxu0
  %878 = vdwg.mxu0
  %v879 = vadd.f32 %v238, %v876
  %v880 = vxor.u32 %v879, 2147483648
  %v881 = vmul.f32 %v880, 1.442695
  %v882 = vpow.pop %v881
  %v883 = vadd.f32 %v882, 1.0
  %v884 = vrcp.pop %v883
  %v885 = vmul.f32 1.0, %v884
  %v886 = vadd.f32 %v876, %v420
  %888 = vrot.lane.b32.xlu0 %v886, 64
  %v889 = vpop.permute.xlu0 %888
  %v891 = vmul.f32 %v885, %v889
  %893 = vrot.lane.b32.xlu0 %v891, 64
  %v894 = vpop.permute.xlu0 %893
  %v896 = vadd.f32 %v238, %v894
  %v897 = vtanh.pop %v896
  %v898 = vsub.f32 1.0, %v885
  %900 = vrot.lane.b32.xlu0 %v897, 96
  %v901 = vpop.permute.xlu0 %900
  %v903 = vmul.f32 %v898, %v901
  %904 = vrot.lane.b32.xlu0 %v803, 32
  %v905 = vpop.permute.xlu0 %904
  %v907 = vmul.f32 %v885, %v905
  %v908 = vadd.f32 %v903, %v907
  %vm909 = vcmp.gt.s32.totalorder %v338, 4
  %v910 = vsel %vm909, %v908, %v905
  %v911 = vsel %vm909, %v908, 0.0
  %913 = vrot.lane.b32.xlu0 %v911, 96
  %v914 = vpop.permute.xlu0 %913
  %916 = vst.msk [vmem:[#allocation2 + $0x8] sm:$0x3] %vm452, %v914
  %918 = vrot.lane.b32.xlu0 %v910, 96
  %v919 = vpop.permute.xlu0 %918
  %v920 = vsel %vm159, %v919, 0
  %922 = vmatprep.subr.mxu0 0.0
  %923 = vmatpush1.msra.mxu0 %v325
  %924 = vmatprep.subr.mxu0 0.0
  %925 = vmatpush1.msra.mxu0 %v326
  %926 = vmatprep.subr.mxu0 0.0
  %927 = vmatpush1.msra.mxu0 %v327
  %928 = vmatprep.subr.mxu0 0.0
  %929 = vmatpush1.msra.mxu0 %v328
  %930 = vmatprep.subr.mxu0 0.0
  %931 = vmatpush1.msra.mxu0 0.0
  %932 = vmatprep.subr.mxu0 0.0
  %933 = vmatpush1.msra.mxu0 0.0
  %934 = vmatprep.subr.mxu0 0.0
  %935 = vmatpush1.msra.mxu0 0.0
  %936 = vmatprep.subr.mxu0 0.0
  %937 = vmatpush1.msra.mxu0 0.0
  %938 = vmatprep.subr.mxu0 0.0
  %939 = vmatpush1.msra.mxu0 0.0
  %940 = vmatprep.subr.mxu0 0.0
  %941 = vmatpush1.msra.mxu0 0.0
  %942 = vmatprep.subr.mxu0 0.0
  %943 = vmatpush1.msra.mxu0 0.0
  %944 = vmatprep.subr.mxu0 0.0
  %945 = vmatpush1.msra.mxu0 0.0
  %946 = vmatprep.subr.mxu0 0.0
  %947 = vmatpush1.msra.mxu0 0.0
  %948 = vmatprep.subr.mxu0 0.0
  %949 = vmatpush1.msra.mxu0 0.0
  %950 = vmatprep.subr.mxu0 0.0
  %951 = vmatpush1.msra.mxu0 0.0
  %952 = vmatprep.subr.mxu0 0.0
  %953 = vmatpush1.msra.mxu0 0.0
  %954 = vmatprep.subr.mxu0 0.0
  %955 = vmatpush1.msra.mxu0 0.0
  %956 = vmatprep.subr.mxu0 0.0
  %957 = vmatpush1.msra.mxu0 0.0
  %958 = vmatprep.subr.mxu0 0.0
  %959 = vmatpush1.msra.mxu0 0.0
  %960 = vmatprep.subr.mxu0 0.0
  %961 = vmatpush1.msra.mxu0 0.0
  %962 = vmatprep.subr.mxu0 0.0
  %963 = vmatpush1.msra.mxu0 0.0
  %964 = vmatprep.subr.mxu0 0.0
  %965 = vmatpush1.msra.mxu0 0.0
  %966 = vmatprep.subr.mxu0 0.0
  %967 = vmatpush1.msra.mxu0 0.0
  %968 = vmatprep.subr.mxu0 0.0
  %969 = vmatpush1.msra.mxu0 0.0
  %970 = vmatprep.subr.mxu0 0.0
  %971 = vmatpush1.msra.mxu0 0.0
  %972 = vmatprep.subr.mxu0 0.0
  %973 = vmatpush1.msra.mxu0 0.0
  %974 = vmatprep.subr.mxu0 0.0
  %975 = vmatpush1.msra.mxu0 0.0
  %976 = vmatprep.subr.mxu0 0.0
  %977 = vmatpush1.msra.mxu0 0.0
  %978 = vmatprep.subr.mxu0 0.0
  %979 = vmatpush1.msra.mxu0 0.0
  %980 = vmatprep.subr.mxu0 0.0
  %981 = vmatpush1.msra.mxu0 0.0
  %982 = vmatprep.subr.mxu0 0.0
  %983 = vmatpush1.msra.mxu0 0.0
  %984 = vmatprep.subr.mxu0 0.0
  %985 = vmatpush1.msra.mxu0 0.0
  %986 = vmatprep.mubr.f32.mxu0 0.0
  %987 = vmatmul.mubr.f32.gmra.mrb[0].mxu0 %v920
  %v988 = vpop.f32.mrb[0].mxu0
  %v989 = vadd.f32 0.0, %v988
  %v990 = vpop.f32.mrb[0].mxu0
  %991 = vdwg.mxu0
  %v993 = vrot.slane %v989, 6
  %v995 = vadd.f32 %v238, %v993
  %v996 = vxor.u32 %v995, 2147483648
  %v997 = vmul.f32 %v996, 1.442695
  %v998 = vpow.pop %v997
  %v999 = vadd.f32 %v998, 1.0
  %v1000 = vrcp.pop %v999
  %v1001 = vmul.f32 1.0, %v1000
  %v1002 = vadd.f32 %v989, %v420
  %v1004 = vrot.slane %v1002, 6
  %1005 = vrot.lane.b32.xlu0 %v1004, 64
  %v1006 = vpop.permute.xlu0 %1005
  %v1008 = vmul.f32 %v1001, %v1006
  %1010 = vrot.lane.b32.xlu0 %v1008, 64
  %v1011 = vpop.permute.xlu0 %1010
  %v1013 = vadd.f32 %v238, %v1011
  %v1014 = vtanh.pop %v1013
  %v1015 = vsub.f32 1.0, %v1001
  %1017 = vrot.lane.b32.xlu0 %v1014, 96
  %v1018 = vpop.permute.xlu0 %1017
  %v1020 = vmul.f32 %v1015, %v1018
  %v1021 = vrot.slane %v910, 6
  %v1023 = vmul.f32 %v1001, %v1021
  %v1024 = vadd.f32 %v1020, %v1023
  %vm1025 = vcmp.gt.s32.totalorder %v338, 5
  %v1027 = vrot.slane %v1024, 2
  %1028 = vrot.lane.b32.xlu0 %v1027, 96
  %v1029 = vpop.permute.xlu0 %1028
  %v1032 = vsel %vm1025, %v1029, %v919
  %v1033 = vsel %vm1025, %v1029, 0.0
  %1034 = vst.msk [vmem:[#allocation2 + $0xa] sm:$0x3] %vm452, %v1033
  %v1036 = vsel %vm159, %v1032, 0
  %1038 = vmatprep.subr.mxu0 0.0
  %1039 = vmatpush1.msra.mxu0 %v325
  %1040 = vmatprep.subr.mxu0 0.0
  %1041 = vmatpush1.msra.mxu0 %v326
  %1042 = vmatprep.subr.mxu0 0.0
  %1043 = vmatpush1.msra.mxu0 %v327
  %1044 = vmatprep.subr.mxu0 0.0
  %1045 = vmatpush1.msra.mxu0 %v328
  %1046 = vmatprep.subr.mxu0 0.0
  %1047 = vmatpush1.msra.mxu0 0.0
  %1048 = vmatprep.subr.mxu0 0.0
  %1049 = vmatpush1.msra.mxu0 0.0
  %1050 = vmatprep.subr.mxu0 0.0
  %1051 = vmatpush1.msra.mxu0 0.0
  %1052 = vmatprep.subr.mxu0 0.0
  %1053 = vmatpush1.msra.mxu0 0.0
  %1054 = vmatprep.subr.mxu0 0.0
  %1055 = vmatpush1.msra.mxu0 0.0
  %1056 = vmatprep.subr.mxu0 0.0
  %1057 = vmatpush1.msra.mxu0 0.0
  %1058 = vmatprep.subr.mxu0 0.0
  %1059 = vmatpush1.msra.mxu0 0.0
  %1060 = vmatprep.subr.mxu0 0.0
  %1061 = vmatpush1.msra.mxu0 0.0
  %1062 = vmatprep.subr.mxu0 0.0
  %1063 = vmatpush1.msra.mxu0 0.0
  %1064 = vmatprep.subr.mxu0 0.0
  %1065 = vmatpush1.msra.mxu0 0.0
  %1066 = vmatprep.subr.mxu0 0.0
  %1067 = vmatpush1.msra.mxu0 0.0
  %1068 = vmatprep.subr.mxu0 0.0
  %1069 = vmatpush1.msra.mxu0 0.0
  %1070 = vmatprep.subr.mxu0 0.0
  %1071 = vmatpush1.msra.mxu0 0.0
  %1072 = vmatprep.subr.mxu0 0.0
  %1073 = vmatpush1.msra.mxu0 0.0
  %1074 = vmatprep.subr.mxu0 0.0
  %1075 = vmatpush1.msra.mxu0 0.0
  %1076 = vmatprep.subr.mxu0 0.0
  %1077 = vmatpush1.msra.mxu0 0.0
  %1078 = vmatprep.subr.mxu0 0.0
  %1079 = vmatpush1.msra.mxu0 0.0
  %1080 = vmatprep.subr.mxu0 0.0
  %1081 = vmatpush1.msra.mxu0 0.0
  %1082 = vmatprep.subr.mxu0 0.0
  %1083 = vmatpush1.msra.mxu0 0.0
  %1084 = vmatprep.subr.mxu0 0.0
  %1085 = vmatpush1.msra.mxu0 0.0
  %1086 = vmatprep.subr.mxu0 0.0
  %1087 = vmatpush1.msra.mxu0 0.0
  %1088 = vmatprep.subr.mxu0 0.0
  %1089 = vmatpush1.msra.mxu0 0.0
  %1090 = vmatprep.subr.mxu0 0.0
  %1091 = vmatpush1.msra.mxu0 0.0
  %1092 = vmatprep.subr.mxu0 0.0
  %1093 = vmatpush1.msra.mxu0 0.0
  %1094 = vmatprep.subr.mxu0 0.0
  %1095 = vmatpush1.msra.mxu0 0.0
  %1096 = vmatprep.subr.mxu0 0.0
  %1097 = vmatpush1.msra.mxu0 0.0
  %1098 = vmatprep.subr.mxu0 0.0
  %1099 = vmatpush1.msra.mxu0 0.0
  %1100 = vmatprep.subr.mxu0 0.0
  %1101 = vmatpush1.msra.mxu0 0.0
  %1102 = vmatprep.mubr.f32.mxu0 0.0
  %1103 = vmatmul.mubr.f32.gmra.mrb[0].mxu0 %v1036
  %v1104 = vpop.f32.mrb[0].mxu0
  %v1105 = vadd.f32 0.0, %v1104
  %v1106 = vpop.f32.mrb[0].mxu0
  %1107 = vdwg.mxu0
  %v1109 = vrot.slane %v1105, 4
  %v1111 = vadd.f32 %v238, %v1109
  %v1112 = vxor.u32 %v1111, 2147483648
  %v1113 = vmul.f32 %v1112, 1.442695
  %v1114 = vpow.pop %v1113
  %v1115 = vadd.f32 %v1114, 1.0
  %v1116 = vrcp.pop %v1115
  %v1117 = vmul.f32 1.0, %v1116
  %v1118 = vadd.f32 %v1105, %v420
  %v1120 = vrot.slane %v1118, 4
  %1121 = vrot.lane.b32.xlu0 %v1120, 64
  %v1122 = vpop.permute.xlu0 %1121
  %v1124 = vmul.f32 %v1117, %v1122
  %1126 = vrot.lane.b32.xlu0 %v1124, 64
  %v1127 = vpop.permute.xlu0 %1126
  %v1129 = vadd.f32 %v238, %v1127
  %v1130 = vtanh.pop %v1129
  %v1131 = vsub.f32 1.0, %v1117
  %1133 = vrot.lane.b32.xlu0 %v1130, 96
  %v1134 = vpop.permute.xlu0 %1133
  %v1136 = vmul.f32 %v1131, %v1134
  %v1137 = vrot.slane %v1032, 4
  %1138 = vrot.lane.b32.xlu0 %v1137, 32
  %v1139 = vpop.permute.xlu0 %1138
  %v1141 = vmul.f32 %v1117, %v1139
  %v1142 = vadd.f32 %v1136, %v1141
  %vm1143 = vcmp.gt.s32.totalorder %v338, 6
  %v1145 = vrot.slane %v1142, 4
  %1146 = vrot.lane.b32.xlu0 %v1145, 96
  %v1147 = vpop.permute.xlu0 %1146
  %v1149 = vsel %vm1143, %v1147, %v1032
  %v1150 = vsel %vm1143, %v1147, 0.0
  %1151 = vst.msk [vmem:[#allocation2 + $0xc] sm:$0x3] %vm452, %v1150
  %v1153 = vsel %vm159, %v1149, 0
  %1155 = vmatprep.subr.mxu0 0.0
  %1156 = vmatpush1.msra.mxu0 %v325
  %1157 = vmatprep.subr.mxu0 0.0
  %1158 = vmatpush1.msra.mxu0 %v326
  %1159 = vmatprep.subr.mxu0 0.0
  %1160 = vmatpush1.msra.mxu0 %v327
  %1161 = vmatprep.subr.mxu0 0.0
  %1162 = vmatpush1.msra.mxu0 %v328
  %1163 = vmatprep.subr.mxu0 0.0
  %1164 = vmatpush1.msra.mxu0 0.0
  %1165 = vmatprep.subr.mxu0 0.0
  %1166 = vmatpush1.msra.mxu0 0.0
  %1167 = vmatprep.subr.mxu0 0.0
  %1168 = vmatpush1.msra.mxu0 0.0
  %1169 = vmatprep.subr.mxu0 0.0
  %1170 = vmatpush1.msra.mxu0 0.0
  %1171 = vmatprep.subr.mxu0 0.0
  %1172 = vmatpush1.msra.mxu0 0.0
  %1173 = vmatprep.subr.mxu0 0.0
  %1174 = vmatpush1.msra.mxu0 0.0
  %1175 = vmatprep.subr.mxu0 0.0
  %1176 = vmatpush1.msra.mxu0 0.0
  %1177 = vmatprep.subr.mxu0 0.0
  %1178 = vmatpush1.msra.mxu0 0.0
  %1179 = vmatprep.subr.mxu0 0.0
  %1180 = vmatpush1.msra.mxu0 0.0
  %1181 = vmatprep.subr.mxu0 0.0
  %1182 = vmatpush1.msra.mxu0 0.0
  %1183 = vmatprep.subr.mxu0 0.0
  %1184 = vmatpush1.msra.mxu0 0.0
  %1185 = vmatprep.subr.mxu0 0.0
  %1186 = vmatpush1.msra.mxu0 0.0
  %1187 = vmatprep.subr.mxu0 0.0
  %1188 = vmatpush1.msra.mxu0 0.0
  %1189 = vmatprep.subr.mxu0 0.0
  %1190 = vmatpush1.msra.mxu0 0.0
  %1191 = vmatprep.subr.mxu0 0.0
  %1192 = vmatpush1.msra.mxu0 0.0
  %1193 = vmatprep.subr.mxu0 0.0
  %1194 = vmatpush1.msra.mxu0 0.0
  %1195 = vmatprep.subr.mxu0 0.0
  %1196 = vmatpush1.msra.mxu0 0.0
  %1197 = vmatprep.subr.mxu0 0.0
  %1198 = vmatpush1.msra.mxu0 0.0
  %1199 = vmatprep.subr.mxu0 0.0
  %1200 = vmatpush1.msra.mxu0 0.0
  %1201 = vmatprep.subr.mxu0 0.0
  %1202 = vmatpush1.msra.mxu0 0.0
  %1203 = vmatprep.subr.mxu0 0.0
  %1204 = vmatpush1.msra.mxu0 0.0
  %1205 = vmatprep.subr.mxu0 0.0
  %1206 = vmatpush1.msra.mxu0 0.0
  %1207 = vmatprep.subr.mxu0 0.0
  %1208 = vmatpush1.msra.mxu0 0.0
  %1209 = vmatprep.subr.mxu0 0.0
  %1210 = vmatpush1.msra.mxu0 0.0
  %1211 = vmatprep.subr.mxu0 0.0
  %1212 = vmatpush1.msra.mxu0 0.0
  %1213 = vmatprep.subr.mxu0 0.0
  %1214 = vmatpush1.msra.mxu0 0.0
  %1215 = vmatprep.subr.mxu0 0.0
  %1216 = vmatpush1.msra.mxu0 0.0
  %1217 = vmatprep.subr.mxu0 0.0
  %1218 = vmatpush1.msra.mxu0 0.0
  %1219 = vmatprep.mubr.f32.mxu0 0.0
  %1220 = vmatmul.mubr.f32.gmra.mrb[0].mxu0 %v1153
  %v1221 = vpop.f32.mrb[0].mxu0
  %v1222 = vadd.f32 0.0, %v1221
  %v1223 = vpop.f32.mrb[0].mxu0
  %1224 = vdwg.mxu0
  %v1226 = vrot.slane %v1222, 2
  %v1228 = vadd.f32 %v238, %v1226
  %v1229 = vxor.u32 %v1228, 2147483648
  %v1230 = vmul.f32 %v1229, 1.442695
  %v1231 = vpow.pop %v1230
  %v1232 = vadd.f32 %v1231, 1.0
  %v1233 = vrcp.pop %v1232
  %v1234 = vmul.f32 1.0, %v1233
  %v1235 = vadd.f32 %v1222, %v420
  %v1237 = vrot.slane %v1235, 2
  %1238 = vrot.lane.b32.xlu0 %v1237, 64
  %v1239 = vpop.permute.xlu0 %1238
  %v1241 = vmul.f32 %v1234, %v1239
  %1243 = vrot.lane.b32.xlu0 %v1241, 64
  %v1244 = vpop.permute.xlu0 %1243
  %v1246 = vadd.f32 %v238, %v1244
  %v1247 = vtanh.pop %v1246
  %v1248 = vsub.f32 1.0, %v1234
  %1250 = vrot.lane.b32.xlu0 %v1247, 96
  %v1251 = vpop.permute.xlu0 %1250
  %v1253 = vmul.f32 %v1248, %v1251
  %v1254 = vrot.slane %v1149, 2
  %1255 = vrot.lane.b32.xlu0 %v1254, 32
  %v1256 = vpop.permute.xlu0 %1255
  %v1258 = vmul.f32 %v1234, %v1256
  %v1259 = vadd.f32 %v1253, %v1258
  %vm1260 = vcmp.gt.s32.totalorder %v338, 7
  %v1262 = vrot.slane %v1259, 6
  %1263 = vrot.lane.b32.xlu0 %v1262, 96
  %v1264 = vpop.permute.xlu0 %1263
  %v1266 = vsel %vm1260, %v1264, 0.0
  %1267 = vst.msk [vmem:[#allocation2 + $0xe] sm:$0x3] %vm452, %v1266
  %v1268 = vld [vmem:[#allocation2] sm:$0xff]
  %v1269 = vld [vmem:[#allocation2 + $0x8] sm:$0xff]
  %v1270 = vld [vmem:[%s10] sm:$0xff]
  %v1271 = vld [vmem:[%s10 + $0x8] sm:$0xff]
  %v1272 = vld [vmem:[%s10 + $0x10] sm:$0xff]
  %v1273 = vld [vmem:[%s10 + $0x18] sm:$0xff]
  %v1274 = vld [vmem:[%s11] sm:$0x1]
  %v1276 = vlaneseq
  %v1277 = vshrl.u32 %v1276, 7
  %v1278 = vsub.s32 0, %v1277
  %v1279 = vrot.slane %v1274, %v1278
  %v1282 = vsel %vm159, %v1268, 0
  %v1285 = vsel %vm159, %v1269, 0
  %1287 = vmatprep.subr.mxu0 0.0
  %1288 = vmatpush1.msra.mxu0 %v1270
  %1289 = vmatprep.subr.mxu0 0.0
  %1290 = vmatpush1.msra.mxu0 %v1271
  %1291 = vmatprep.subr.mxu0 0.0
  %1292 = vmatpush1.msra.mxu0 %v1272
  %1293 = vmatprep.subr.mxu0 0.0
  %1294 = vmatpush1.msra.mxu0 %v1273
  %1295 = vmatprep.subr.mxu0 0.0
  %1296 = vmatpush1.msra.mxu0 0.0
  %1297 = vmatprep.subr.mxu0 0.0
  %1298 = vmatpush1.msra.mxu0 0.0
  %1299 = vmatprep.subr.mxu0 0.0
  %1300 = vmatpush1.msra.mxu0 0.0
  %1301 = vmatprep.subr.mxu0 0.0
  %1302 = vmatpush1.msra.mxu0 0.0
  %1303 = vmatprep.subr.mxu0 0.0
  %1304 = vmatpush1.msra.mxu0 0.0
  %1305 = vmatprep.subr.mxu0 0.0
  %1306 = vmatpush1.msra.mxu0 0.0
  %1307 = vmatprep.subr.mxu0 0.0
  %1308 = vmatpush1.msra.mxu0 0.0
  %1309 = vmatprep.subr.mxu0 0.0
  %1310 = vmatpush1.msra.mxu0 0.0
  %1311 = vmatprep.subr.mxu0 0.0
  %1312 = vmatpush1.msra.mxu0 0.0
  %1313 = vmatprep.subr.mxu0 0.0
  %1314 = vmatpush1.msra.mxu0 0.0
  %1315 = vmatprep.subr.mxu0 0.0
  %1316 = vmatpush1.msra.mxu0 0.0
  %1317 = vmatprep.subr.mxu0 0.0
  %1318 = vmatpush1.msra.mxu0 0.0
  %1319 = vmatprep.subr.mxu0 0.0
  %1320 = vmatpush1.msra.mxu0 0.0
  %1321 = vmatprep.subr.mxu0 0.0
  %1322 = vmatpush1.msra.mxu0 0.0
  %1323 = vmatprep.subr.mxu0 0.0
  %1324 = vmatpush1.msra.mxu0 0.0
  %1325 = vmatprep.subr.mxu0 0.0
  %1326 = vmatpush1.msra.mxu0 0.0
  %1327 = vmatprep.subr.mxu0 0.0
  %1328 = vmatpush1.msra.mxu0 0.0
  %1329 = vmatprep.subr.mxu0 0.0
  %1330 = vmatpush1.msra.mxu0 0.0
  %1331 = vmatprep.subr.mxu0 0.0
  %1332 = vmatpush1.msra.mxu0 0.0
  %1333 = vmatprep.subr.mxu0 0.0
  %1334 = vmatpush1.msra.mxu0 0.0
  %1335 = vmatprep.subr.mxu0 0.0
  %1336 = vmatpush1.msra.mxu0 0.0
  %1337 = vmatprep.subr.mxu0 0.0
  %1338 = vmatpush1.msra.mxu0 0.0
  %1339 = vmatprep.subr.mxu0 0.0
  %1340 = vmatpush1.msra.mxu0 0.0
  %1341 = vmatprep.subr.mxu0 0.0
  %1342 = vmatpush1.msra.mxu0 0.0
  %1343 = vmatprep.subr.mxu0 0.0
  %1344 = vmatpush1.msra.mxu0 0.0
  %1345 = vmatprep.subr.mxu0 0.0
  %1346 = vmatpush1.msra.mxu0 0.0
  %1347 = vmatprep.subr.mxu0 0.0
  %1348 = vmatpush1.msra.mxu0 0.0
  %1349 = vmatprep.subr.mxu0 0.0
  %1350 = vmatpush1.msra.mxu0 0.0
  %1351 = vmatprep.mubr.f32.mxu0 0.0
  %1352 = vmatmul.mubr.f32.gmra.mrb[0].mxu0 %v1282
  %v1353 = vpop.f32.mrb[0].mxu0
  %v1354 = vadd.f32 %v1279, %v1353
  %v1355 = vpop.f32.mrb[0].mxu0
  %1356 = vmatprep.mubr.f32.mxu0 0.0
  %1357 = vmatmul.mubr.f32.gmra.mrb[0].mxu0 %v1285
  %v1358 = vpop.f32.mrb[0].mxu0
  %v1359 = vadd.f32 %v1279, %v1358
  %v1360 = vpop.f32.mrb[0].mxu0
  %1361 = vdwg.mxu0
  %1362 = vst [vmem:[%s12] sm:$0xff] %v1354
  %1363 = vst [vmem:[%s12 + $0x8] sm:$0xff] %v1359
  // Predicated region
  $region50: #{_fused_forward.1} parent=0 // pred_check
    _
  $region51: #{_fused_forward.1} parent=0 // pred_check_branch
    %1365 = sbr.rel (0) target = $region53
  $region52: #{_fused_forward.1} parent=0 // pred_region
    _
  $region53: #{_fused_forward.1} parent=0 // pred_fallthru
    _
  // Predicated region
  $region54: #{_fused_forward.1} parent=0 // pred_check
    _
  $region55: #{_fused_forward.1} parent=0 // pred_check_branch
    %1367 = sbr.rel (0) target = $region57
  $region56: #{_fused_forward.1} parent=0 // pred_region
    _
  $region57: #{_fused_forward.1} parent=0 // pred_fallthru
    _

</llo_original>
